<compile_context>
chip_gen: v7x
topology: tpu7x:2x2x1
jax: 0.10.0
libtpu: 0.0.40
codegen_flags: <defaults>
</compile_context>

<pallas_src>
import jax
import jax.numpy as jnp
import numpy as np
from jax.experimental import pallas as pl
from jax.experimental.pallas import tpu as pltpu


def _bilinear_kernel(a_rows_ref, xv_t_ref, xu_t_ref, scheme_ref, o_ref):
    """One tile of TILE_P pairs (lane axis) against all relation matrices.

    a_rows_ref : (num_schemes*dim, dim) f32  -- a_rows[s*dim+e, d] = A_sym[s, d, e],
                                                VMEM-resident across the grid.
    xv_t_ref   : (dim, TILE_P) f32           -- x[pairs[:,0]] transposed (pair per lane)
    xu_t_ref   : (dim, TILE_P) f32           -- x[pairs[:,1]] transposed
    scheme_ref : (1, TILE_P)  int32          -- scheme index per pair
    o_ref      : (1, TILE_P)  f32            -- y per pair (lane-dense store)
    """
    ns_dim, dim = a_rows_ref.shape
    tile_p = xv_t_ref.shape[1]
    num_schemes = ns_dim // dim

    # (NS*dim, dim) @ (dim, TILE_P) -> (NS*dim, TILE_P): single MXU matmul
    # covering every scheme for every pair in this tile.
    t = jnp.dot(a_rows_ref[...], xv_t_ref[...],
                preferred_element_type=jnp.float32,
                precision=jax.lax.Precision.HIGHEST)

    # Replicate xu rows once per scheme block: xu_rep[s*dim + e, p] = xu[p, e].
    xu_rep = jnp.tile(xu_t_ref[...], (num_schemes, 1))

    # Keep only the rows belonging to each pair's scheme (VPU mask, no division).
    row_id = jax.lax.broadcasted_iota(jnp.int32, (ns_dim, tile_p), 0)
    lo = scheme_ref[...] * dim                                   # (1, TILE_P)
    mask = jnp.logical_and(row_id >= lo, row_id < lo + dim)      # (NS*dim, TILE_P)

    contrib = jnp.where(mask, t * xu_rep, 0.0)
    o_ref[...] = jnp.sum(contrib, axis=0, keepdims=True)         # (1, TILE_P)


def forward_pallas(x, A, pairs, scheme_idx, *, tile_p=256):
    """y[n] = x[pairs[n,0]] @ ((A[s_n] + A[s_n].T)/2) @ x[pairs[n,1]],  s_n = scheme_idx[n]."""
    n_pairs = pairs.shape[0]
    num_schemes, dim, _ = A.shape

    # Hoisted out of the kernel (done once, tiny): symmetrize and stack schemes
    # along rows so one matmul covers all relations.
    A_sym = (A + jnp.swapaxes(A, 1, 2)) * 0.5
    a_rows = jnp.swapaxes(A_sym, 1, 2).reshape(num_schemes * dim, dim)

    # Pre-gather embedding rows for both sides of each pair; pairs on the lane
    # axis so kernel loads, the matmul N-dim, and output stores are lane-dense.
    pairs = pairs.astype(jnp.int32)
    xv_t = x[pairs[:, 0]].T                         # (dim, n_pairs)
    xu_t = x[pairs[:, 1]].T                         # (dim, n_pairs)

    # Pad the ragged tail: padded pairs contribute 0 and are sliced off below.
    n_blocks = pl.cdiv(n_pairs, tile_p)
    n_pad = n_blocks * tile_p
    pad = n_pad - n_pairs
    xv_t = jnp.pad(xv_t, ((0, 0), (0, pad)))
    xu_t = jnp.pad(xu_t, ((0, 0), (0, pad)))
    scheme = jnp.pad(scheme_idx.astype(jnp.int32), (0, pad)).reshape(1, n_pad)

    grid_spec = pltpu.PrefetchScalarGridSpec(
        num_scalar_prefetch=0,
        grid=(n_blocks,),
        in_specs=[
            # All-schemes A_sym stays resident in VMEM for the whole grid.
            pl.BlockSpec((num_schemes * dim, dim), lambda i: (0, 0)),
            pl.BlockSpec((dim, tile_p), lambda i: (0, i)),
            pl.BlockSpec((dim, tile_p), lambda i: (0, i)),
            pl.BlockSpec((1, tile_p), lambda i: (0, i)),
        ],
        out_specs=pl.BlockSpec((1, tile_p), lambda i: (i, 0)),
    )

    y = pl.pallas_call(
        _bilinear_kernel,
        out_shape=jax.ShapeDtypeStruct((n_blocks, tile_p), jnp.float32),
        grid_spec=grid_spec,
        compiler_params=pltpu.CompilerParams(
            dimension_semantics=("parallel",)),   # blocks independent -> v7x 2 TCs
    )(a_rows, xv_t, xu_t, scheme)

    return y.reshape(-1)[:n_pairs]


def forward_reference(x, A, pairs, scheme_idx):
    A_sym = (A + jnp.swapaxes(A, 1, 2)) * 0.5
    Ag = A_sym[scheme_idx]
    xv = x[pairs[:, 0]]
    xu = x[pairs[:, 1]]
    return jnp.einsum('nd,nde,ne->n', xv, Ag, xu,
                      precision=jax.lax.Precision.HIGHEST)


def _run_case(key, dim, num_tuples, num_schemes, n_pairs):
    k_x, k_A, k_p, k_s = jax.random.split(key, 4)
    # Parameter init mirroring torch.nn.init.normal_: x ~ N(0, 1/dim), A ~ N(0, 1)
    x = jax.random.normal(k_x, (num_tuples, dim), jnp.float32) * np.sqrt(1.0 / dim)
    A = jax.random.normal(k_A, (num_schemes, dim, dim), jnp.float32)
    pairs = jax.random.randint(k_p, (n_pairs, 2), 0, num_tuples, jnp.int32)
    scheme_idx = jax.random.randint(k_s, (n_pairs,), 0, num_schemes, jnp.int32)

    y = jax.block_until_ready(forward_pallas(x, A, pairs, scheme_idx))
    y_ref = forward_reference(x, A, pairs, scheme_idx)
    np.testing.assert_allclose(np.asarray(y), np.asarray(y_ref),
                               rtol=1e-4, atol=1e-4)


if __name__ == "__main__":
    key = jax.random.PRNGKey(0)
    k1, k2 = jax.random.split(key)

    # Small case consistent with the module's __init__ (single grid block + tail pad).
    _run_case(k1, dim=32, num_tuples=16, num_schemes=4, n_pairs=8)

    # Multi-block grid, non-power-of-two scheme count, ragged tail.
    _run_case(k2, dim=64, num_tuples=40, num_schemes=3, n_pairs=600)

    print("KERNEL_OK")
</pallas_src>

<mosaic_0001>
module attributes {stable_mosaic.version = 11 : i64} {
  func.func @_bilinear_kernel(%arg0: i32, %arg1: memref<128x32xf32, #tpu.memory_space<vmem>>, %arg2: memref<32x256xf32, #tpu.memory_space<vmem>>, %arg3: memref<32x256xf32, #tpu.memory_space<vmem>>, %arg4: memref<1x256xi32, #tpu.memory_space<vmem>>, %arg5: memref<1x256xf32, #tpu.memory_space<vmem>>) attributes {dimension_semantics = [#tpu.dimension_semantics<parallel>], iteration_bounds = array<i64: 1>, scalar_prefetch = 0 : i64, scratch_operands = 0 : i64, tpu.core_type = #tpu.core_type<tc>, window_params = [{pipeline_mode = #tpu.pipeline_mode<synchronous>, transform_indices = @transform_0, window_bounds = array<i64: 128, 32>}, {transform_indices = @transform_1, window_bounds = array<i64: 32, 256>}, {transform_indices = @transform_2, window_bounds = array<i64: 32, 256>}, {transform_indices = @transform_3, window_bounds = array<i64: 1, 256>}, {transform_indices = @transform_4, window_bounds = array<i64: 1, 256>}]} {
    %c0 = arith.constant 0 : index
    %c0_0 = arith.constant 0 : index
    %0 = vector.load %arg1[%c0, %c0_0] : memref<128x32xf32, #tpu.memory_space<vmem>>, vector<128x32xf32>
    %c0_1 = arith.constant 0 : index
    %c0_2 = arith.constant 0 : index
    %1 = vector.load %arg2[%c0_1, %c0_2] : memref<32x256xf32, #tpu.memory_space<vmem>>, vector<32x256xf32>
    %cst = arith.constant dense<0.000000e+00> : vector<128x256xf32>
    %2 = tpu.matmul %0, %1, %cst {dimension_numbers = #tpu.dot_dimension_numbers<[1], [0], [0], [1], [0, 0, 1, 1], [], []>, precision = #tpu.contract_precision<fp32>} : vector<128x32xf32>, vector<32x256xf32>, vector<128x256xf32> -> vector<128x256xf32>
    %c0_3 = arith.constant 0 : index
    %c0_4 = arith.constant 0 : index
    %3 = vector.load %arg3[%c0_3, %c0_4] : memref<32x256xf32, #tpu.memory_space<vmem>>, vector<32x256xf32>
    %4 = tpu.concatenate %3, %3, %3, %3 in 0 : vector<32x256xf32>, vector<32x256xf32>, vector<32x256xf32>, vector<32x256xf32> -> vector<128x256xf32>
    %5 = tpu.iota {dimensions = array<i32: 0>} : vector<128x256xi32>
    %c0_5 = arith.constant 0 : index
    %c0_6 = arith.constant 0 : index
    %6 = vector.load %arg4[%c0_5, %c0_6] : memref<1x256xi32, #tpu.memory_space<vmem>>, vector<1x256xi32>
    %c32_i32 = arith.constant 32 : i32
    %7 = vector.broadcast %c32_i32 : i32 to vector<1x256xi32>
    %8 = arith.muli %6, %7 : vector<1x256xi32>
    %9 = vector.broadcast %8 : vector<1x256xi32> to vector<128x256xi32>
    %10 = arith.cmpi sge, %5, %9 : vector<128x256xi32>
    %c32_i32_7 = arith.constant 32 : i32
    %11 = vector.broadcast %c32_i32_7 : i32 to vector<1x256xi32>
    %12 = arith.addi %8, %11 : vector<1x256xi32>
    %13 = vector.broadcast %12 : vector<1x256xi32> to vector<128x256xi32>
    %14 = arith.cmpi slt, %5, %13 : vector<128x256xi32>
    %15 = arith.andi %10, %14 : vector<128x256xi1>
    %16 = arith.mulf %2, %4 : vector<128x256xf32>
    %cst_8 = arith.constant 0.000000e+00 : f32
    %17 = vector.broadcast %cst_8 : f32 to vector<128x256xf32>
    %18 = arith.select %15, %16, %17 : vector<128x256xi1>, vector<128x256xf32>
    %cst_9 = arith.constant dense<0.000000e+00> : vector<256xf32>
    %19 = vector.multi_reduction <add>, %18, %cst_9 [0] : vector<128x256xf32> to vector<256xf32>
    %20 = vector.shape_cast %19 : vector<256xf32> to vector<1x256xf32>
    %c0_10 = arith.constant 0 : index
    %c0_11 = arith.constant 0 : index
    %21 = vector.load %arg5[%c0_10, %c0_11] : memref<1x256xf32, #tpu.memory_space<vmem>>, vector<1x256xf32>
    tpu.vector_store %arg5[%c0_10, %c0_11], %20 {strides = array<i32>} : memref<1x256xf32, #tpu.memory_space<vmem>>, vector<1x256xf32>,
    return
  }
  func.func @transform_0(%arg0: i32) -> (i32, i32) {
    %c0_i32 = arith.constant 0 : i32
    %c0_i32_0 = arith.constant 0 : i32
    %c0_i32_1 = arith.constant 0 : i32
    return %c0_i32, %c0_i32_0 : i32, i32
  }
  func.func @transform_1(%arg0: i32) -> (i32, i32) {
    %c0_i32 = arith.constant 0 : i32
    %c0_i32_0 = arith.constant 0 : i32
    return %c0_i32, %arg0 : i32, i32
  }
  func.func @transform_2(%arg0: i32) -> (i32, i32) {
    %c0_i32 = arith.constant 0 : i32
    %c0_i32_0 = arith.constant 0 : i32
    return %c0_i32, %arg0 : i32, i32
  }
  func.func @transform_3(%arg0: i32) -> (i32, i32) {
    %c0_i32 = arith.constant 0 : i32
    %c0_i32_0 = arith.constant 0 : i32
    return %c0_i32, %arg0 : i32, i32
  }
  func.func @transform_4(%arg0: i32) -> (i32, i32) {
    %c0_i32 = arith.constant 0 : i32
    %c0_i32_0 = arith.constant 0 : i32
    return %arg0, %c0_i32 : i32, i32
  }
}

</mosaic_0001>

<llo_original>
// kernel: tpu_custom_call.1
$region0: #{tpu_custom_call.1}
  #allocation0 [shape = 'u32[]', space=smem, size = 0x4, offset = 0x4, fixed_abs, tag = 'smem constant byte address 0x4 - core index']
  #allocation1 [shape = 'u32[144,128]{1,0:T(1,128)}', space=vmem, size = 0x12000, scoped, tag = 'internal scratch']
  %s0 = inlined_call_operand.vmem [shape: f32[128,32], index: 0, kind: input, shape index: {}]
  %s1 = inlined_call_operand.vmem [shape: f32[32,256], index: 1, kind: input, shape index: {}]
  %s2 = inlined_call_operand.vmem [shape: f32[32,256], index: 2, kind: input, shape index: {}]
  %s3 = inlined_call_operand.vmem [shape: s32[1,256], index: 3, kind: input, shape index: {}]
  %s4 = inlined_call_operand.hbm [shape: f32[1,256], index: 4, kind: output, shape index: {}]
  %s5 = sld [smem:[#allocation0]]
  $region26: #{tpu_custom_call.1} parent=0
    _
  %s7 = ssub.s32 1, %s5
  %s8 = scalar_select 0, %s7, %s5
  $region1: #{tpu_custom_call.1} parent=0
    #allocation2 [shape = 'u8[1024]{0}', space=vmem, size = 0x400, scoped, tag = 'output window, operand 0, single buffered']
    #allocation3 [shape = 's32[1]{0}', space=sflag, size = 0x4, scoped, tag = 'scoped memory for tpu_custom_call.1']
    %9 = vsyncpa [#allocation3], 0
    // Predicated region
    $region2: #{tpu_custom_call.1} parent=1 // pred_check
      _
    $region3: #{tpu_custom_call.1} parent=1 // pred_check_branch
      %11 = sbr.rel (0) target = $region5
    $region4: #{tpu_custom_call.1} parent=1 // pred_region
      _
    $region5: #{tpu_custom_call.1} parent=1 // pred_fallthru
      _
    // Predicated region
    $region6: #{tpu_custom_call.1} parent=1 // pred_check
      _
    $region7: #{tpu_custom_call.1} parent=1 // pred_check_branch
      %13 = sbr.rel (0) target = $region9
    $region8: #{tpu_custom_call.1} parent=1 // pred_region
      _
    $region9: #{tpu_custom_call.1} parent=1 // pred_fallthru
      _
    // Predicated region
    $region10: #{tpu_custom_call.1} parent=1 // pred_check
      _
    $region11: #{tpu_custom_call.1} parent=1 // pred_check_branch
      %15 = sbr.rel (0) target = $region13
    $region12: #{tpu_custom_call.1} parent=1 // pred_region
      _
    $region13: #{tpu_custom_call.1} parent=1 // pred_fallthru
      _
    // Predicated region
    $region14: #{tpu_custom_call.1} parent=1 // pred_check
      _
    $region15: #{tpu_custom_call.1} parent=1 // pred_check_branch
      %17 = sbr.rel (0) target = $region17
    $region16: #{tpu_custom_call.1} parent=1 // pred_region
      _
    $region17: #{tpu_custom_call.1} parent=1 // pred_fallthru
      _
    %v18 = vld [vmem:[%s0] sm:$0xff]
    %v19 = vld [vmem:[%s0 + $0x8] sm:$0xff]
    %v20 = vld [vmem:[%s0 + $0x10] sm:$0xff]
    %v21 = vld [vmem:[%s0 + $0x18] sm:$0xff]
    %v22 = vld [vmem:[%s0 + $0x20] sm:$0xff]
    %v23 = vld [vmem:[%s0 + $0x28] sm:$0xff]
    %v24 = vld [vmem:[%s0 + $0x30] sm:$0xff]
    %v25 = vld [vmem:[%s0 + $0x38] sm:$0xff]
    %v26 = vld [vmem:[%s0 + $0x40] sm:$0xff]
    %v27 = vld [vmem:[%s0 + $0x48] sm:$0xff]
    %v28 = vld [vmem:[%s0 + $0x50] sm:$0xff]
    %v29 = vld [vmem:[%s0 + $0x58] sm:$0xff]
    %v30 = vld [vmem:[%s0 + $0x60] sm:$0xff]
    %v31 = vld [vmem:[%s0 + $0x68] sm:$0xff]
    %v32 = vld [vmem:[%s0 + $0x70] sm:$0xff]
    %v33 = vld [vmem:[%s0 + $0x78] sm:$0xff]
    %v34 = vld [vmem:[%s1] sm:$0xff]
    %v35 = vld [vmem:[%s1 + $0x8] sm:$0xff]
    %v36 = vld [vmem:[%s1 + $0x10] sm:$0xff]
    %v37 = vld [vmem:[%s1 + $0x18] sm:$0xff]
    %v38 = vld [vmem:[%s1 + $0x20] sm:$0xff]
    %v39 = vld [vmem:[%s1 + $0x28] sm:$0xff]
    %v40 = vld [vmem:[%s1 + $0x30] sm:$0xff]
    %v41 = vld [vmem:[%s1 + $0x38] sm:$0xff]
    %vm42 = vcmask 261120
    %v44 = vsel %vm42, %v18, 0
    %v47 = vsel %vm42, %v19, 0
    %v50 = vsel %vm42, %v20, 0
    %v53 = vsel %vm42, %v21, 0
    %v56 = vsel %vm42, %v22, 0
    %v59 = vsel %vm42, %v23, 0
    %v62 = vsel %vm42, %v24, 0
    %v65 = vsel %vm42, %v25, 0
    %v68 = vsel %vm42, %v26, 0
    %v71 = vsel %vm42, %v27, 0
    %v74 = vsel %vm42, %v28, 0
    %v77 = vsel %vm42, %v29, 0
    %v80 = vsel %vm42, %v30, 0
    %v83 = vsel %vm42, %v31, 0
    %v86 = vsel %vm42, %v32, 0
    %v89 = vsel %vm42, %v33, 0
    %v91 = vand.u32 %v35, 4294901760
    %92 = vmatprep.subr.mxu0 %v91
    %v93 = vand.u32 %v34, 4294901760
    %94 = vmatpush1.msra.mxu0 %v93
    %v95 = vand.u32 %v37, 4294901760
    %96 = vmatprep.subr.mxu0 %v95
    %v97 = vand.u32 %v36, 4294901760
    %98 = vmatpush1.msra.mxu0 %v97
    %v99 = vand.u32 %v39, 4294901760
    %100 = vmatprep.subr.mxu0 %v99
    %v101 = vand.u32 %v38, 4294901760
    %102 = vmatpush1.msra.mxu0 %v101
    %v103 = vand.u32 %v41, 4294901760
    %104 = vmatprep.subr.mxu0 %v103
    %v105 = vand.u32 %v40, 4294901760
    %106 = vmatpush1.msra.mxu0 %v105
    %107 = vmatprep.subr.mxu0 0.0
    %108 = vmatpush1.msra.mxu0 0.0
    %109 = vmatprep.subr.mxu0 0.0
    %110 = vmatpush1.msra.mxu0 0.0
    %111 = vmatprep.subr.mxu0 0.0
    %112 = vmatpush1.msra.mxu0 0.0
    %113 = vmatprep.subr.mxu0 0.0
    %114 = vmatpush1.msra.mxu0 0.0
    %115 = vmatprep.subr.mxu0 0.0
    %116 = vmatpush1.msra.mxu0 0.0
    %117 = vmatprep.subr.mxu0 0.0
    %118 = vmatpush1.msra.mxu0 0.0
    %119 = vmatprep.subr.mxu0 0.0
    %120 = vmatpush1.msra.mxu0 0.0
    %121 = vmatprep.subr.mxu0 0.0
    %122 = vmatpush1.msra.mxu0 0.0
    %123 = vmatprep.subr.mxu0 0.0
    %124 = vmatpush1.msra.mxu0 0.0
    %125 = vmatprep.subr.mxu0 0.0
    %126 = vmatpush1.msra.mxu0 0.0
    %127 = vmatprep.subr.mxu0 0.0
    %128 = vmatpush1.msra.mxu0 0.0
    %129 = vmatprep.subr.mxu0 0.0
    %130 = vmatpush1.msra.mxu0 0.0
    %131 = vmatprep.subr.mxu0 0.0
    %132 = vmatpush1.msra.mxu0 0.0
    %133 = vmatprep.subr.mxu0 0.0
    %134 = vmatpush1.msra.mxu0 0.0
    %135 = vmatprep.subr.mxu0 0.0
    %136 = vmatpush1.msra.mxu0 0.0
    %137 = vmatprep.subr.mxu0 0.0
    %138 = vmatpush1.msra.mxu0 0.0
    %139 = vmatprep.subr.mxu0 0.0
    %140 = vmatpush1.msra.mxu0 0.0
    %141 = vmatprep.subr.mxu0 0.0
    %142 = vmatpush1.msra.mxu0 0.0
    %143 = vmatprep.subr.mxu0 0.0
    %144 = vmatpush1.msra.mxu0 0.0
    %145 = vmatprep.subr.mxu0 0.0
    %146 = vmatpush1.msra.mxu0 0.0
    %147 = vmatprep.subr.mxu0 0.0
    %148 = vmatpush1.msra.mxu0 0.0
    %149 = vmatprep.subr.mxu0 0.0
    %150 = vmatpush1.msra.mxu0 0.0
    %151 = vmatprep.subr.mxu0 0.0
    %152 = vmatpush1.msra.mxu0 0.0
    %153 = vmatprep.subr.mxu0 0.0
    %154 = vmatpush1.msra.mxu0 0.0
    %155 = vmatprep.subr.mxu0 0.0
    %156 = vmatpush1.msra.mxu0 0.0
    %157 = vmatprep.subr.mxu0 0.0
    %158 = vmatpush1.msra.mxu0 0.0
    %159 = vmatprep.subr.mxu0 0.0
    %160 = vmatpush1.msra.mxu0 0.0
    %161 = vmatprep.subr.mxu0 0.0
    %162 = vmatpush1.msra.mxu0 0.0
    %163 = vmatprep.mubr.f32.mxu0 0.0
    %v164 = vand.u32 %v44, 4294901760
    %v165 = vsub.f32 %v44, %v164
    %v166 = vand.u32 %v165, 4294901760
    %v167 = vsub.f32 %v165, %v166
    %v168 = vand.u32 %v167, 4294901760
    %169 = vmatmul.mubr.f32.gmra.mrb[0].mxu0 %v168
    %v170 = vpop.f32.mrb[0].mxu0
    %v171 = vadd.f32 0.0, %v170
    %v172 = vpop.f32.mrb[0].mxu0
    %v173 = vadd.f32 0.0, %v172
    %174 = vmatprep.mubr.f32.mxu0 0.0
    %v175 = vand.u32 %v47, 4294901760
    %v176 = vsub.f32 %v47, %v175
    %v177 = vand.u32 %v176, 4294901760
    %v178 = vsub.f32 %v176, %v177
    %v179 = vand.u32 %v178, 4294901760
    %180 = vmatmul.mubr.f32.gmra.mrb[0].mxu0 %v179
    %v181 = vpop.f32.mrb[0].mxu0
    %v182 = vadd.f32 0.0, %v181
    %v183 = vpop.f32.mrb[0].mxu0
    %v184 = vadd.f32 0.0, %v183
    %185 = vmatprep.mubr.f32.mxu0 0.0
    %v186 = vand.u32 %v50, 4294901760
    %v187 = vsub.f32 %v50, %v186
    %v188 = vand.u32 %v187, 4294901760
    %v189 = vsub.f32 %v187, %v188
    %v190 = vand.u32 %v189, 4294901760
    %191 = vmatmul.mubr.f32.gmra.mrb[0].mxu0 %v190
    %v192 = vpop.f32.mrb[0].mxu0
    %v193 = vadd.f32 0.0, %v192
    %v194 = vpop.f32.mrb[0].mxu0
    %v195 = vadd.f32 0.0, %v194
    %196 = vmatprep.mubr.f32.mxu0 0.0
    %v197 = vand.u32 %v53, 4294901760
    %v198 = vsub.f32 %v53, %v197
    %v199 = vand.u32 %v198, 4294901760
    %v200 = vsub.f32 %v198, %v199
    %v201 = vand.u32 %v200, 4294901760
    %202 = vmatmul.mubr.f32.gmra.mrb[0].mxu0 %v201
    %v203 = vpop.f32.mrb[0].mxu0
    %v204 = vadd.f32 0.0, %v203
    %v205 = vpop.f32.mrb[0].mxu0
    %v206 = vadd.f32 0.0, %v205
    %207 = vmatprep.mubr.f32.mxu0 0.0
    %v208 = vand.u32 %v56, 4294901760
    %v209 = vsub.f32 %v56, %v208
    %v210 = vand.u32 %v209, 4294901760
    %v211 = vsub.f32 %v209, %v210
    %v212 = vand.u32 %v211, 4294901760
    %213 = vmatmul.mubr.f32.gmra.mrb[0].mxu0 %v212
    %v214 = vpop.f32.mrb[0].mxu0
    %v215 = vadd.f32 0.0, %v214
    %v216 = vpop.f32.mrb[0].mxu0
    %v217 = vadd.f32 0.0, %v216
    %218 = vmatprep.mubr.f32.mxu0 0.0
    %v219 = vand.u32 %v59, 4294901760
    %v220 = vsub.f32 %v59, %v219
    %v221 = vand.u32 %v220, 4294901760
    %v222 = vsub.f32 %v220, %v221
    %v223 = vand.u32 %v222, 4294901760
    %224 = vmatmul.mubr.f32.gmra.mrb[0].mxu0 %v223
    %v225 = vpop.f32.mrb[0].mxu0
    %v226 = vadd.f32 0.0, %v225
    %v227 = vpop.f32.mrb[0].mxu0
    %v228 = vadd.f32 0.0, %v227
    %229 = vmatprep.mubr.f32.mxu0 0.0
    %v230 = vand.u32 %v62, 4294901760
    %v231 = vsub.f32 %v62, %v230
    %v232 = vand.u32 %v231, 4294901760
    %v233 = vsub.f32 %v231, %v232
    %v234 = vand.u32 %v233, 4294901760
    %235 = vmatmul.mubr.f32.gmra.mrb[0].mxu0 %v234
    %v236 = vpop.f32.mrb[0].mxu0
    %v237 = vadd.f32 0.0, %v236
    %v238 = vpop.f32.mrb[0].mxu0
    %v239 = vadd.f32 0.0, %v238
    %240 = vmatprep.mubr.f32.mxu0 0.0
    %v241 = vand.u32 %v65, 4294901760
    %v242 = vsub.f32 %v65, %v241
    %v243 = vand.u32 %v242, 4294901760
    %v244 = vsub.f32 %v242, %v243
    %v245 = vand.u32 %v244, 4294901760
    %246 = vmatmul.mubr.f32.gmra.mrb[0].mxu0 %v245
    %v247 = vpop.f32.mrb[0].mxu0
    %v248 = vadd.f32 0.0, %v247
    %v249 = vpop.f32.mrb[0].mxu0
    %v250 = vadd.f32 0.0, %v249
    %251 = vmatprep.mubr.f32.mxu0 0.0
    %v252 = vand.u32 %v68, 4294901760
    %v253 = vsub.f32 %v68, %v252
    %v254 = vand.u32 %v253, 4294901760
    %v255 = vsub.f32 %v253, %v254
    %v256 = vand.u32 %v255, 4294901760
    %257 = vmatmul.mubr.f32.gmra.mrb[0].mxu0 %v256
    %v258 = vpop.f32.mrb[0].mxu0
    %v259 = vadd.f32 0.0, %v258
    %v260 = vpop.f32.mrb[0].mxu0
    %v261 = vadd.f32 0.0, %v260
    %262 = vmatprep.mubr.f32.mxu0 0.0
    %v263 = vand.u32 %v71, 4294901760
    %v264 = vsub.f32 %v71, %v263
    %v265 = vand.u32 %v264, 4294901760
    %v266 = vsub.f32 %v264, %v265
    %v267 = vand.u32 %v266, 4294901760
    %268 = vmatmul.mubr.f32.gmra.mrb[0].mxu0 %v267
    %v269 = vpop.f32.mrb[0].mxu0
    %v270 = vadd.f32 0.0, %v269
    %v271 = vpop.f32.mrb[0].mxu0
    %v272 = vadd.f32 0.0, %v271
    %273 = vmatprep.mubr.f32.mxu0 0.0
    %v274 = vand.u32 %v74, 4294901760
    %v275 = vsub.f32 %v74, %v274
    %v276 = vand.u32 %v275, 4294901760
    %v277 = vsub.f32 %v275, %v276
    %v278 = vand.u32 %v277, 4294901760
    %279 = vmatmul.mubr.f32.gmra.mrb[0].mxu0 %v278
    %v280 = vpop.f32.mrb[0].mxu0
    %v281 = vadd.f32 0.0, %v280
    %v282 = vpop.f32.mrb[0].mxu0
    %v283 = vadd.f32 0.0, %v282
    %284 = vmatprep.mubr.f32.mxu0 0.0
    %v285 = vand.u32 %v77, 4294901760
    %v286 = vsub.f32 %v77, %v285
    %v287 = vand.u32 %v286, 4294901760
    %v288 = vsub.f32 %v286, %v287
    %v289 = vand.u32 %v288, 4294901760
    %290 = vmatmul.mubr.f32.gmra.mrb[0].mxu0 %v289
    %v291 = vpop.f32.mrb[0].mxu0
    %v292 = vadd.f32 0.0, %v291
    %v293 = vpop.f32.mrb[0].mxu0
    %v294 = vadd.f32 0.0, %v293
    %295 = vmatprep.mubr.f32.mxu0 0.0
    %v296 = vand.u32 %v80, 4294901760
    %v297 = vsub.f32 %v80, %v296
    %v298 = vand.u32 %v297, 4294901760
    %v299 = vsub.f32 %v297, %v298
    %v300 = vand.u32 %v299, 4294901760
    %301 = vmatmul.mubr.f32.gmra.mrb[0].mxu0 %v300
    %v302 = vpop.f32.mrb[0].mxu0
    %v303 = vadd.f32 0.0, %v302
    %v304 = vpop.f32.mrb[0].mxu0
    %v305 = vadd.f32 0.0, %v304
    %306 = vmatprep.mubr.f32.mxu0 0.0
    %v307 = vand.u32 %v83, 4294901760
    %v308 = vsub.f32 %v83, %v307
    %v309 = vand.u32 %v308, 4294901760
    %v310 = vsub.f32 %v308, %v309
    %v311 = vand.u32 %v310, 4294901760
    %312 = vmatmul.mubr.f32.gmra.mrb[0].mxu0 %v311
    %v313 = vpop.f32.mrb[0].mxu0
    %v314 = vadd.f32 0.0, %v313
    %v315 = vpop.f32.mrb[0].mxu0
    %v316 = vadd.f32 0.0, %v315
    %317 = vmatprep.mubr.f32.mxu0 0.0
    %v318 = vand.u32 %v86, 4294901760
    %v319 = vsub.f32 %v86, %v318
    %v320 = vand.u32 %v319, 4294901760
    %v321 = vsub.f32 %v319, %v320
    %v322 = vand.u32 %v321, 4294901760
    %323 = vmatmul.mubr.f32.gmra.mrb[0].mxu0 %v322
    %v324 = vpop.f32.mrb[0].mxu0
    %v325 = vadd.f32 0.0, %v324
    %v326 = vpop.f32.mrb[0].mxu0
    %v327 = vadd.f32 0.0, %v326
    %328 = vmatprep.mubr.f32.mxu0 0.0
    %v329 = vand.u32 %v89, 4294901760
    %v330 = vsub.f32 %v89, %v329
    %v331 = vand.u32 %v330, 4294901760
    %v332 = vsub.f32 %v330, %v331
    %v333 = vand.u32 %v332, 4294901760
    %334 = vmatmul.mubr.f32.gmra.mrb[0].mxu0 %v333
    %v335 = vpop.f32.mrb[0].mxu0
    %v336 = vadd.f32 0.0, %v335
    %v337 = vpop.f32.mrb[0].mxu0
    %v338 = vadd.f32 0.0, %v337
    %339 = vdwg.mxu0
    %v340 = vand.u32 %v35, 4294901760
    %v341 = vsub.f32 %v35, %v340
    %v342 = vand.u32 %v341, 4294901760
    %v343 = vsub.f32 %v341, %v342
    %v344 = vand.u32 %v343, 4294901760
    %345 = vmatprep.subr.mxu0 %v344
    %v346 = vand.u32 %v34, 4294901760
    %v347 = vsub.f32 %v34, %v346
    %v348 = vand.u32 %v347, 4294901760
    %v349 = vsub.f32 %v347, %v348
    %v350 = vand.u32 %v349, 4294901760
    %351 = vmatpush1.msra.mxu0 %v350
    %v352 = vand.u32 %v37, 4294901760
    %v353 = vsub.f32 %v37, %v352
    %v354 = vand.u32 %v353, 4294901760
    %v355 = vsub.f32 %v353, %v354
    %v356 = vand.u32 %v355, 4294901760
    %357 = vmatprep.subr.mxu0 %v356
    %v358 = vand.u32 %v36, 4294901760
    %v359 = vsub.f32 %v36, %v358
    %v360 = vand.u32 %v359, 4294901760
    %v361 = vsub.f32 %v359, %v360
    %v362 = vand.u32 %v361, 4294901760
    %363 = vmatpush1.msra.mxu0 %v362
    %v364 = vand.u32 %v39, 4294901760
    %v365 = vsub.f32 %v39, %v364
    %v366 = vand.u32 %v365, 4294901760
    %v367 = vsub.f32 %v365, %v366
    %v368 = vand.u32 %v367, 4294901760
    %369 = vmatprep.subr.mxu0 %v368
    %v370 = vand.u32 %v38, 4294901760
    %v371 = vsub.f32 %v38, %v370
    %v372 = vand.u32 %v371, 4294901760
    %v373 = vsub.f32 %v371, %v372
    %v374 = vand.u32 %v373, 4294901760
    %375 = vmatpush1.msra.mxu0 %v374
    %v376 = vand.u32 %v41, 4294901760
    %v377 = vsub.f32 %v41, %v376
    %v378 = vand.u32 %v377, 4294901760
    %v379 = vsub.f32 %v377, %v378
    %v380 = vand.u32 %v379, 4294901760
    %381 = vmatprep.subr.mxu0 %v380
    %v382 = vand.u32 %v40, 4294901760
    %v383 = vsub.f32 %v40, %v382
    %v384 = vand.u32 %v383, 4294901760
    %v385 = vsub.f32 %v383, %v384
    %v386 = vand.u32 %v385, 4294901760
    %387 = vmatpush1.msra.mxu0 %v386
    %388 = vmatprep.subr.mxu0 0.0
    %389 = vmatpush1.msra.mxu0 0.0
    %390 = vmatprep.subr.mxu0 0.0
    %391 = vmatpush1.msra.mxu0 0.0
    %392 = vmatprep.subr.mxu0 0.0
    %393 = vmatpush1.msra.mxu0 0.0
    %394 = vmatprep.subr.mxu0 0.0
    %395 = vmatpush1.msra.mxu0 0.0
    %396 = vmatprep.subr.mxu0 0.0
    %397 = vmatpush1.msra.mxu0 0.0
    %398 = vmatprep.subr.mxu0 0.0
    %399 = vmatpush1.msra.mxu0 0.0
    %400 = vmatprep.subr.mxu0 0.0
    %401 = vmatpush1.msra.mxu0 0.0
    %402 = vmatprep.subr.mxu0 0.0
    %403 = vmatpush1.msra.mxu0 0.0
    %404 = vmatprep.subr.mxu0 0.0
    %405 = vmatpush1.msra.mxu0 0.0
    %406 = vmatprep.subr.mxu0 0.0
    %407 = vmatpush1.msra.mxu0 0.0
    %408 = vmatprep.subr.mxu0 0.0
    %409 = vmatpush1.msra.mxu0 0.0
    %410 = vmatprep.subr.mxu0 0.0
    %411 = vmatpush1.msra.mxu0 0.0
    %412 = vmatprep.subr.mxu0 0.0
    %413 = vmatpush1.msra.mxu0 0.0
    %414 = vmatprep.subr.mxu0 0.0
    %415 = vmatpush1.msra.mxu0 0.0
    %416 = vmatprep.subr.mxu0 0.0
    %417 = vmatpush1.msra.mxu0 0.0
    %418 = vmatprep.subr.mxu0 0.0
    %419 = vmatpush1.msra.mxu0 0.0
    %420 = vmatprep.subr.mxu0 0.0
    %421 = vmatpush1.msra.mxu0 0.0
    %422 = vmatprep.subr.mxu0 0.0
    %423 = vmatpush1.msra.mxu0 0.0
    %424 = vmatprep.subr.mxu0 0.0
    %425 = vmatpush1.msra.mxu0 0.0
    %426 = vmatprep.subr.mxu0 0.0
    %427 = vmatpush1.msra.mxu0 0.0
    %428 = vmatprep.subr.mxu0 0.0
    %429 = vmatpush1.msra.mxu0 0.0
    %430 = vmatprep.subr.mxu0 0.0
    %431 = vmatpush1.msra.mxu0 0.0
    %432 = vmatprep.subr.mxu0 0.0
    %433 = vmatpush1.msra.mxu0 0.0
    %434 = vmatprep.subr.mxu0 0.0
    %435 = vmatpush1.msra.mxu0 0.0
    %436 = vmatprep.subr.mxu0 0.0
    %437 = vmatpush1.msra.mxu0 0.0
    %438 = vmatprep.subr.mxu0 0.0
    %439 = vmatpush1.msra.mxu0 0.0
    %440 = vmatprep.subr.mxu0 0.0
    %441 = vmatpush1.msra.mxu0 0.0
    %442 = vmatprep.subr.mxu0 0.0
    %443 = vmatpush1.msra.mxu0 0.0
    %444 = vmatprep.mubr.f32.mxu0 0.0
    %v445 = vand.u32 %v44, 4294901760
    %446 = vmatmul.mubr.f32.gmra.mrb[0].mxu0 %v445
    %v447 = vpop.f32.mrb[0].mxu0
    %v448 = vadd.f32 %v171, %v447
    %v449 = vpop.f32.mrb[0].mxu0
    %v450 = vadd.f32 %v173, %v449
    %451 = vmatprep.mubr.f32.mxu0 0.0
    %v452 = vand.u32 %v47, 4294901760
    %453 = vmatmul.mubr.f32.gmra.mrb[0].mxu0 %v452
    %v454 = vpop.f32.mrb[0].mxu0
    %v455 = vadd.f32 %v182, %v454
    %v456 = vpop.f32.mrb[0].mxu0
    %v457 = vadd.f32 %v184, %v456
    %458 = vmatprep.mubr.f32.mxu0 0.0
    %v459 = vand.u32 %v50, 4294901760
    %460 = vmatmul.mubr.f32.gmra.mrb[0].mxu0 %v459
    %v461 = vpop.f32.mrb[0].mxu0
    %v462 = vadd.f32 %v193, %v461
    %v463 = vpop.f32.mrb[0].mxu0
    %v464 = vadd.f32 %v195, %v463
    %465 = vmatprep.mubr.f32.mxu0 0.0
    %v466 = vand.u32 %v53, 4294901760
    %467 = vmatmul.mubr.f32.gmra.mrb[0].mxu0 %v466
    %v468 = vpop.f32.mrb[0].mxu0
    %v469 = vadd.f32 %v204, %v468
    %v470 = vpop.f32.mrb[0].mxu0
    %v471 = vadd.f32 %v206, %v470
    %472 = vmatprep.mubr.f32.mxu0 0.0
    %v473 = vand.u32 %v56, 4294901760
    %474 = vmatmul.mubr.f32.gmra.mrb[0].mxu0 %v473
    %v475 = vpop.f32.mrb[0].mxu0
    %v476 = vadd.f32 %v215, %v475
    %v477 = vpop.f32.mrb[0].mxu0
    %v478 = vadd.f32 %v217, %v477
    %479 = vmatprep.mubr.f32.mxu0 0.0
    %v480 = vand.u32 %v59, 4294901760
    %481 = vmatmul.mubr.f32.gmra.mrb[0].mxu0 %v480
    %v482 = vpop.f32.mrb[0].mxu0
    %v483 = vadd.f32 %v226, %v482
    %v484 = vpop.f32.mrb[0].mxu0
    %v485 = vadd.f32 %v228, %v484
    %486 = vmatprep.mubr.f32.mxu0 0.0
    %v487 = vand.u32 %v62, 4294901760
    %488 = vmatmul.mubr.f32.gmra.mrb[0].mxu0 %v487
    %v489 = vpop.f32.mrb[0].mxu0
    %v490 = vadd.f32 %v237, %v489
    %v491 = vpop.f32.mrb[0].mxu0
    %v492 = vadd.f32 %v239, %v491
    %493 = vmatprep.mubr.f32.mxu0 0.0
    %v494 = vand.u32 %v65, 4294901760
    %495 = vmatmul.mubr.f32.gmra.mrb[0].mxu0 %v494
    %v496 = vpop.f32.mrb[0].mxu0
    %v497 = vadd.f32 %v248, %v496
    %v498 = vpop.f32.mrb[0].mxu0
    %v499 = vadd.f32 %v250, %v498
    %500 = vmatprep.mubr.f32.mxu0 0.0
    %v501 = vand.u32 %v68, 4294901760
    %502 = vmatmul.mubr.f32.gmra.mrb[0].mxu0 %v501
    %v503 = vpop.f32.mrb[0].mxu0
    %v504 = vadd.f32 %v259, %v503
    %v505 = vpop.f32.mrb[0].mxu0
    %v506 = vadd.f32 %v261, %v505
    %507 = vmatprep.mubr.f32.mxu0 0.0
    %v508 = vand.u32 %v71, 4294901760
    %509 = vmatmul.mubr.f32.gmra.mrb[0].mxu0 %v508
    %v510 = vpop.f32.mrb[0].mxu0
    %v511 = vadd.f32 %v270, %v510
    %v512 = vpop.f32.mrb[0].mxu0
    %v513 = vadd.f32 %v272, %v512
    %514 = vmatprep.mubr.f32.mxu0 0.0
    %v515 = vand.u32 %v74, 4294901760
    %516 = vmatmul.mubr.f32.gmra.mrb[0].mxu0 %v515
    %v517 = vpop.f32.mrb[0].mxu0
    %v518 = vadd.f32 %v281, %v517
    %v519 = vpop.f32.mrb[0].mxu0
    %v520 = vadd.f32 %v283, %v519
    %521 = vmatprep.mubr.f32.mxu0 0.0
    %v522 = vand.u32 %v77, 4294901760
    %523 = vmatmul.mubr.f32.gmra.mrb[0].mxu0 %v522
    %v524 = vpop.f32.mrb[0].mxu0
    %v525 = vadd.f32 %v292, %v524
    %v526 = vpop.f32.mrb[0].mxu0
    %v527 = vadd.f32 %v294, %v526
    %528 = vmatprep.mubr.f32.mxu0 0.0
    %v529 = vand.u32 %v80, 4294901760
    %530 = vmatmul.mubr.f32.gmra.mrb[0].mxu0 %v529
    %v531 = vpop.f32.mrb[0].mxu0
    %v532 = vadd.f32 %v303, %v531
    %v533 = vpop.f32.mrb[0].mxu0
    %v534 = vadd.f32 %v305, %v533
    %535 = vmatprep.mubr.f32.mxu0 0.0
    %v536 = vand.u32 %v83, 4294901760
    %537 = vmatmul.mubr.f32.gmra.mrb[0].mxu0 %v536
    %v538 = vpop.f32.mrb[0].mxu0
    %v539 = vadd.f32 %v314, %v538
    %v540 = vpop.f32.mrb[0].mxu0
    %v541 = vadd.f32 %v316, %v540
    %542 = vmatprep.mubr.f32.mxu0 0.0
    %v543 = vand.u32 %v86, 4294901760
    %544 = vmatmul.mubr.f32.gmra.mrb[0].mxu0 %v543
    %v545 = vpop.f32.mrb[0].mxu0
    %v546 = vadd.f32 %v325, %v545
    %v547 = vpop.f32.mrb[0].mxu0
    %v548 = vadd.f32 %v327, %v547
    %549 = vmatprep.mubr.f32.mxu0 0.0
    %v550 = vand.u32 %v89, 4294901760
    %551 = vmatmul.mubr.f32.gmra.mrb[0].mxu0 %v550
    %v552 = vpop.f32.mrb[0].mxu0
    %v553 = vadd.f32 %v336, %v552
    %v554 = vpop.f32.mrb[0].mxu0
    %v555 = vadd.f32 %v338, %v554
    %556 = vdwg.mxu0
    %v557 = vand.u32 %v35, 4294901760
    %v558 = vsub.f32 %v35, %v557
    %559 = vmatprep.subr.mxu0 %v558
    %v560 = vand.u32 %v34, 4294901760
    %v561 = vsub.f32 %v34, %v560
    %562 = vmatpush1.msra.mxu0 %v561
    %v563 = vand.u32 %v37, 4294901760
    %v564 = vsub.f32 %v37, %v563
    %565 = vmatprep.subr.mxu0 %v564
    %v566 = vand.u32 %v36, 4294901760
    %v567 = vsub.f32 %v36, %v566
    %568 = vmatpush1.msra.mxu0 %v567
    %v569 = vand.u32 %v39, 4294901760
    %v570 = vsub.f32 %v39, %v569
    %571 = vmatprep.subr.mxu0 %v570
    %v572 = vand.u32 %v38, 4294901760
    %v573 = vsub.f32 %v38, %v572
    %574 = vmatpush1.msra.mxu0 %v573
    %v575 = vand.u32 %v41, 4294901760
    %v576 = vsub.f32 %v41, %v575
    %577 = vmatprep.subr.mxu0 %v576
    %v578 = vand.u32 %v40, 4294901760
    %v579 = vsub.f32 %v40, %v578
    %580 = vmatpush1.msra.mxu0 %v579
    %581 = vmatprep.subr.mxu0 0.0
    %582 = vmatpush1.msra.mxu0 0.0
    %583 = vmatprep.subr.mxu0 0.0
    %584 = vmatpush1.msra.mxu0 0.0
    %585 = vmatprep.subr.mxu0 0.0
    %586 = vmatpush1.msra.mxu0 0.0
    %587 = vmatprep.subr.mxu0 0.0
    %588 = vmatpush1.msra.mxu0 0.0
    %589 = vmatprep.subr.mxu0 0.0
    %590 = vmatpush1.msra.mxu0 0.0
    %591 = vmatprep.subr.mxu0 0.0
    %592 = vmatpush1.msra.mxu0 0.0
    %593 = vmatprep.subr.mxu0 0.0
    %594 = vmatpush1.msra.mxu0 0.0
    %595 = vmatprep.subr.mxu0 0.0
    %596 = vmatpush1.msra.mxu0 0.0
    %597 = vmatprep.subr.mxu0 0.0
    %598 = vmatpush1.msra.mxu0 0.0
    %599 = vmatprep.subr.mxu0 0.0
    %600 = vmatpush1.msra.mxu0 0.0
    %601 = vmatprep.subr.mxu0 0.0
    %602 = vmatpush1.msra.mxu0 0.0
    %603 = vmatprep.subr.mxu0 0.0
    %604 = vmatpush1.msra.mxu0 0.0
    %605 = vmatprep.subr.mxu0 0.0
    %606 = vmatpush1.msra.mxu0 0.0
    %607 = vmatprep.subr.mxu0 0.0
    %608 = vmatpush1.msra.mxu0 0.0
    %609 = vmatprep.subr.mxu0 0.0
    %610 = vmatpush1.msra.mxu0 0.0
    %611 = vmatprep.subr.mxu0 0.0
    %612 = vmatpush1.msra.mxu0 0.0
    %613 = vmatprep.subr.mxu0 0.0
    %614 = vmatpush1.msra.mxu0 0.0
    %615 = vmatprep.subr.mxu0 0.0
    %616 = vmatpush1.msra.mxu0 0.0
    %617 = vmatprep.subr.mxu0 0.0
    %618 = vmatpush1.msra.mxu0 0.0
    %619 = vmatprep.subr.mxu0 0.0
    %620 = vmatpush1.msra.mxu0 0.0
    %621 = vmatprep.subr.mxu0 0.0
    %622 = vmatpush1.msra.mxu0 0.0
    %623 = vmatprep.subr.mxu0 0.0
    %624 = vmatpush1.msra.mxu0 0.0
    %625 = vmatprep.subr.mxu0 0.0
    %626 = vmatpush1.msra.mxu0 0.0
    %627 = vmatprep.subr.mxu0 0.0
    %628 = vmatpush1.msra.mxu0 0.0
    %629 = vmatprep.subr.mxu0 0.0
    %630 = vmatpush1.msra.mxu0 0.0
    %631 = vmatprep.subr.mxu0 0.0
    %632 = vmatpush1.msra.mxu0 0.0
    %633 = vmatprep.subr.mxu0 0.0
    %634 = vmatpush1.msra.mxu0 0.0
    %635 = vmatprep.subr.mxu0 0.0
    %636 = vmatpush1.msra.mxu0 0.0
    %637 = vmatprep.mubr.f32.mxu0 0.0
    %v638 = vand.u32 %v44, 4294901760
    %v639 = vsub.f32 %v44, %v638
    %640 = vmatmul.mubr.f32.gmra.mrb[0].mxu0 %v639
    %v641 = vpop.f32.mrb[0].mxu0
    %v642 = vadd.f32 %v448, %v641
    %v643 = vpop.f32.mrb[0].mxu0
    %v644 = vadd.f32 %v450, %v643
    %645 = vmatprep.mubr.f32.mxu0 0.0
    %v646 = vand.u32 %v47, 4294901760
    %v647 = vsub.f32 %v47, %v646
    %648 = vmatmul.mubr.f32.gmra.mrb[0].mxu0 %v647
    %v649 = vpop.f32.mrb[0].mxu0
    %v650 = vadd.f32 %v455, %v649
    %v651 = vpop.f32.mrb[0].mxu0
    %v652 = vadd.f32 %v457, %v651
    %653 = vmatprep.mubr.f32.mxu0 0.0
    %v654 = vand.u32 %v50, 4294901760
    %v655 = vsub.f32 %v50, %v654
    %656 = vmatmul.mubr.f32.gmra.mrb[0].mxu0 %v655
    %v657 = vpop.f32.mrb[0].mxu0
    %v658 = vadd.f32 %v462, %v657
    %v659 = vpop.f32.mrb[0].mxu0
    %v660 = vadd.f32 %v464, %v659
    %661 = vmatprep.mubr.f32.mxu0 0.0
    %v662 = vand.u32 %v53, 4294901760
    %v663 = vsub.f32 %v53, %v662
    %664 = vmatmul.mubr.f32.gmra.mrb[0].mxu0 %v663
    %v665 = vpop.f32.mrb[0].mxu0
    %v666 = vadd.f32 %v469, %v665
    %v667 = vpop.f32.mrb[0].mxu0
    %v668 = vadd.f32 %v471, %v667
    %669 = vmatprep.mubr.f32.mxu0 0.0
    %v670 = vand.u32 %v56, 4294901760
    %v671 = vsub.f32 %v56, %v670
    %672 = vmatmul.mubr.f32.gmra.mrb[0].mxu0 %v671
    %v673 = vpop.f32.mrb[0].mxu0
    %v674 = vadd.f32 %v476, %v673
    %v675 = vpop.f32.mrb[0].mxu0
    %v676 = vadd.f32 %v478, %v675
    %677 = vmatprep.mubr.f32.mxu0 0.0
    %v678 = vand.u32 %v59, 4294901760
    %v679 = vsub.f32 %v59, %v678
    %680 = vmatmul.mubr.f32.gmra.mrb[0].mxu0 %v679
    %v681 = vpop.f32.mrb[0].mxu0
    %v682 = vadd.f32 %v483, %v681
    %v683 = vpop.f32.mrb[0].mxu0
    %v684 = vadd.f32 %v485, %v683
    %685 = vmatprep.mubr.f32.mxu0 0.0
    %v686 = vand.u32 %v62, 4294901760
    %v687 = vsub.f32 %v62, %v686
    %688 = vmatmul.mubr.f32.gmra.mrb[0].mxu0 %v687
    %v689 = vpop.f32.mrb[0].mxu0
    %v690 = vadd.f32 %v490, %v689
    %v691 = vpop.f32.mrb[0].mxu0
    %v692 = vadd.f32 %v492, %v691
    %693 = vmatprep.mubr.f32.mxu0 0.0
    %v694 = vand.u32 %v65, 4294901760
    %v695 = vsub.f32 %v65, %v694
    %696 = vmatmul.mubr.f32.gmra.mrb[0].mxu0 %v695
    %v697 = vpop.f32.mrb[0].mxu0
    %v698 = vadd.f32 %v497, %v697
    %v699 = vpop.f32.mrb[0].mxu0
    %v700 = vadd.f32 %v499, %v699
    %701 = vmatprep.mubr.f32.mxu0 0.0
    %v702 = vand.u32 %v68, 4294901760
    %v703 = vsub.f32 %v68, %v702
    %704 = vmatmul.mubr.f32.gmra.mrb[0].mxu0 %v703
    %v705 = vpop.f32.mrb[0].mxu0
    %v706 = vadd.f32 %v504, %v705
    %v707 = vpop.f32.mrb[0].mxu0
    %v708 = vadd.f32 %v506, %v707
    %709 = vmatprep.mubr.f32.mxu0 0.0
    %v710 = vand.u32 %v71, 4294901760
    %v711 = vsub.f32 %v71, %v710
    %712 = vmatmul.mubr.f32.gmra.mrb[0].mxu0 %v711
    %v713 = vpop.f32.mrb[0].mxu0
    %v714 = vadd.f32 %v511, %v713
    %v715 = vpop.f32.mrb[0].mxu0
    %v716 = vadd.f32 %v513, %v715
    %717 = vmatprep.mubr.f32.mxu0 0.0
    %v718 = vand.u32 %v74, 4294901760
    %v719 = vsub.f32 %v74, %v718
    %720 = vmatmul.mubr.f32.gmra.mrb[0].mxu0 %v719
    %v721 = vpop.f32.mrb[0].mxu0
    %v722 = vadd.f32 %v518, %v721
    %v723 = vpop.f32.mrb[0].mxu0
    %v724 = vadd.f32 %v520, %v723
    %725 = vmatprep.mubr.f32.mxu0 0.0
    %v726 = vand.u32 %v77, 4294901760
    %v727 = vsub.f32 %v77, %v726
    %728 = vmatmul.mubr.f32.gmra.mrb[0].mxu0 %v727
    %v729 = vpop.f32.mrb[0].mxu0
    %v730 = vadd.f32 %v525, %v729
    %v731 = vpop.f32.mrb[0].mxu0
    %v732 = vadd.f32 %v527, %v731
    %733 = vmatprep.mubr.f32.mxu0 0.0
    %v734 = vand.u32 %v80, 4294901760
    %v735 = vsub.f32 %v80, %v734
    %736 = vmatmul.mubr.f32.gmra.mrb[0].mxu0 %v735
    %v737 = vpop.f32.mrb[0].mxu0
    %v738 = vadd.f32 %v532, %v737
    %v739 = vpop.f32.mrb[0].mxu0
    %v740 = vadd.f32 %v534, %v739
    %741 = vmatprep.mubr.f32.mxu0 0.0
    %v742 = vand.u32 %v83, 4294901760
    %v743 = vsub.f32 %v83, %v742
    %744 = vmatmul.mubr.f32.gmra.mrb[0].mxu0 %v743
    %v745 = vpop.f32.mrb[0].mxu0
    %v746 = vadd.f32 %v539, %v745
    %v747 = vpop.f32.mrb[0].mxu0
    %v748 = vadd.f32 %v541, %v747
    %749 = vmatprep.mubr.f32.mxu0 0.0
    %v750 = vand.u32 %v86, 4294901760
    %v751 = vsub.f32 %v86, %v750
    %752 = vmatmul.mubr.f32.gmra.mrb[0].mxu0 %v751
    %v753 = vpop.f32.mrb[0].mxu0
    %v754 = vadd.f32 %v546, %v753
    %v755 = vpop.f32.mrb[0].mxu0
    %v756 = vadd.f32 %v548, %v755
    %757 = vmatprep.mubr.f32.mxu0 0.0
    %v758 = vand.u32 %v89, 4294901760
    %v759 = vsub.f32 %v89, %v758
    %760 = vmatmul.mubr.f32.gmra.mrb[0].mxu0 %v759
    %v761 = vpop.f32.mrb[0].mxu0
    %v762 = vadd.f32 %v553, %v761
    %v763 = vpop.f32.mrb[0].mxu0
    %v764 = vadd.f32 %v555, %v763
    %765 = vdwg.mxu0
    %v766 = vand.u32 %v35, 4294901760
    %767 = vmatprep.subr.mxu0 %v766
    %v768 = vand.u32 %v34, 4294901760
    %769 = vmatpush1.msra.mxu0 %v768
    %v770 = vand.u32 %v37, 4294901760
    %771 = vmatprep.subr.mxu0 %v770
    %v772 = vand.u32 %v36, 4294901760
    %773 = vmatpush1.msra.mxu0 %v772
    %v774 = vand.u32 %v39, 4294901760
    %775 = vmatprep.subr.mxu0 %v774
    %v776 = vand.u32 %v38, 4294901760
    %777 = vmatpush1.msra.mxu0 %v776
    %v778 = vand.u32 %v41, 4294901760
    %779 = vmatprep.subr.mxu0 %v778
    %v780 = vand.u32 %v40, 4294901760
    %781 = vmatpush1.msra.mxu0 %v780
    %782 = vmatprep.subr.mxu0 0.0
    %783 = vmatpush1.msra.mxu0 0.0
    %784 = vmatprep.subr.mxu0 0.0
    %785 = vmatpush1.msra.mxu0 0.0
    %786 = vmatprep.subr.mxu0 0.0
    %787 = vmatpush1.msra.mxu0 0.0
    %788 = vmatprep.subr.mxu0 0.0
    %789 = vmatpush1.msra.mxu0 0.0
    %790 = vmatprep.subr.mxu0 0.0
    %791 = vmatpush1.msra.mxu0 0.0
    %792 = vmatprep.subr.mxu0 0.0
    %793 = vmatpush1.msra.mxu0 0.0
    %794 = vmatprep.subr.mxu0 0.0
    %795 = vmatpush1.msra.mxu0 0.0
    %796 = vmatprep.subr.mxu0 0.0
    %797 = vmatpush1.msra.mxu0 0.0
    %798 = vmatprep.subr.mxu0 0.0
    %799 = vmatpush1.msra.mxu0 0.0
    %800 = vmatprep.subr.mxu0 0.0
    %801 = vmatpush1.msra.mxu0 0.0
    %802 = vmatprep.subr.mxu0 0.0
    %803 = vmatpush1.msra.mxu0 0.0
    %804 = vmatprep.subr.mxu0 0.0
    %805 = vmatpush1.msra.mxu0 0.0
    %806 = vmatprep.subr.mxu0 0.0
    %807 = vmatpush1.msra.mxu0 0.0
    %808 = vmatprep.subr.mxu0 0.0
    %809 = vmatpush1.msra.mxu0 0.0
    %810 = vmatprep.subr.mxu0 0.0
    %811 = vmatpush1.msra.mxu0 0.0
    %812 = vmatprep.subr.mxu0 0.0
    %813 = vmatpush1.msra.mxu0 0.0
    %814 = vmatprep.subr.mxu0 0.0
    %815 = vmatpush1.msra.mxu0 0.0
    %816 = vmatprep.subr.mxu0 0.0
    %817 = vmatpush1.msra.mxu0 0.0
    %818 = vmatprep.subr.mxu0 0.0
    %819 = vmatpush1.msra.mxu0 0.0
    %820 = vmatprep.subr.mxu0 0.0
    %821 = vmatpush1.msra.mxu0 0.0
    %822 = vmatprep.subr.mxu0 0.0
    %823 = vmatpush1.msra.mxu0 0.0
    %824 = vmatprep.subr.mxu0 0.0
    %825 = vmatpush1.msra.mxu0 0.0
    %826 = vmatprep.subr.mxu0 0.0
    %827 = vmatpush1.msra.mxu0 0.0
    %828 = vmatprep.subr.mxu0 0.0
    %829 = vmatpush1.msra.mxu0 0.0
    %830 = vmatprep.subr.mxu0 0.0
    %831 = vmatpush1.msra.mxu0 0.0
    %832 = vmatprep.subr.mxu0 0.0
    %833 = vmatpush1.msra.mxu0 0.0
    %834 = vmatprep.subr.mxu0 0.0
    %835 = vmatpush1.msra.mxu0 0.0
    %836 = vmatprep.subr.mxu0 0.0
    %837 = vmatpush1.msra.mxu0 0.0
    %838 = vmatprep.mubr.f32.mxu0 0.0
    %v839 = vand.u32 %v44, 4294901760
    %v840 = vsub.f32 %v44, %v839
    %v841 = vand.u32 %v840, 4294901760
    %842 = vmatmul.mubr.f32.gmra.mrb[0].mxu0 %v841
    %v843 = vpop.f32.mrb[0].mxu0
    %v844 = vadd.f32 %v642, %v843
    %v845 = vpop.f32.mrb[0].mxu0
    %v846 = vadd.f32 %v644, %v845
    %847 = vmatprep.mubr.f32.mxu0 0.0
    %v848 = vand.u32 %v47, 4294901760
    %v849 = vsub.f32 %v47, %v848
    %v850 = vand.u32 %v849, 4294901760
    %851 = vmatmul.mubr.f32.gmra.mrb[0].mxu0 %v850
    %v852 = vpop.f32.mrb[0].mxu0
    %v853 = vadd.f32 %v650, %v852
    %v854 = vpop.f32.mrb[0].mxu0
    %v855 = vadd.f32 %v652, %v854
    %856 = vmatprep.mubr.f32.mxu0 0.0
    %v857 = vand.u32 %v50, 4294901760
    %v858 = vsub.f32 %v50, %v857
    %v859 = vand.u32 %v858, 4294901760
    %860 = vmatmul.mubr.f32.gmra.mrb[0].mxu0 %v859
    %v861 = vpop.f32.mrb[0].mxu0
    %v862 = vadd.f32 %v658, %v861
    %v863 = vpop.f32.mrb[0].mxu0
    %v864 = vadd.f32 %v660, %v863
    %865 = vmatprep.mubr.f32.mxu0 0.0
    %v866 = vand.u32 %v53, 4294901760
    %v867 = vsub.f32 %v53, %v866
    %v868 = vand.u32 %v867, 4294901760
    %869 = vmatmul.mubr.f32.gmra.mrb[0].mxu0 %v868
    %v870 = vpop.f32.mrb[0].mxu0
    %v871 = vadd.f32 %v666, %v870
    %v872 = vpop.f32.mrb[0].mxu0
    %v873 = vadd.f32 %v668, %v872
    %874 = vmatprep.mubr.f32.mxu0 0.0
    %v875 = vand.u32 %v56, 4294901760
    %v876 = vsub.f32 %v56, %v875
    %v877 = vand.u32 %v876, 4294901760
    %878 = vmatmul.mubr.f32.gmra.mrb[0].mxu0 %v877
    %v879 = vpop.f32.mrb[0].mxu0
    %v880 = vadd.f32 %v674, %v879
    %v881 = vpop.f32.mrb[0].mxu0
    %v882 = vadd.f32 %v676, %v881
    %883 = vmatprep.mubr.f32.mxu0 0.0
    %v884 = vand.u32 %v59, 4294901760
    %v885 = vsub.f32 %v59, %v884
    %v886 = vand.u32 %v885, 4294901760
    %887 = vmatmul.mubr.f32.gmra.mrb[0].mxu0 %v886
    %v888 = vpop.f32.mrb[0].mxu0
    %v889 = vadd.f32 %v682, %v888
    %v890 = vpop.f32.mrb[0].mxu0
    %v891 = vadd.f32 %v684, %v890
    %892 = vmatprep.mubr.f32.mxu0 0.0
    %v893 = vand.u32 %v62, 4294901760
    %v894 = vsub.f32 %v62, %v893
    %v895 = vand.u32 %v894, 4294901760
    %896 = vmatmul.mubr.f32.gmra.mrb[0].mxu0 %v895
    %v897 = vpop.f32.mrb[0].mxu0
    %v898 = vadd.f32 %v690, %v897
    %v899 = vpop.f32.mrb[0].mxu0
    %v900 = vadd.f32 %v692, %v899
    %901 = vmatprep.mubr.f32.mxu0 0.0
    %v902 = vand.u32 %v65, 4294901760
    %v903 = vsub.f32 %v65, %v902
    %v904 = vand.u32 %v903, 4294901760
    %905 = vmatmul.mubr.f32.gmra.mrb[0].mxu0 %v904
    %v906 = vpop.f32.mrb[0].mxu0
    %v907 = vadd.f32 %v698, %v906
    %v908 = vpop.f32.mrb[0].mxu0
    %v909 = vadd.f32 %v700, %v908
    %910 = vmatprep.mubr.f32.mxu0 0.0
    %v911 = vand.u32 %v68, 4294901760
    %v912 = vsub.f32 %v68, %v911
    %v913 = vand.u32 %v912, 4294901760
    %914 = vmatmul.mubr.f32.gmra.mrb[0].mxu0 %v913
    %v915 = vpop.f32.mrb[0].mxu0
    %v916 = vadd.f32 %v706, %v915
    %v917 = vpop.f32.mrb[0].mxu0
    %v918 = vadd.f32 %v708, %v917
    %919 = vmatprep.mubr.f32.mxu0 0.0
    %v920 = vand.u32 %v71, 4294901760
    %v921 = vsub.f32 %v71, %v920
    %v922 = vand.u32 %v921, 4294901760
    %923 = vmatmul.mubr.f32.gmra.mrb[0].mxu0 %v922
    %v924 = vpop.f32.mrb[0].mxu0
    %v925 = vadd.f32 %v714, %v924
    %v926 = vpop.f32.mrb[0].mxu0
    %v927 = vadd.f32 %v716, %v926
    %928 = vmatprep.mubr.f32.mxu0 0.0
    %v929 = vand.u32 %v74, 4294901760
    %v930 = vsub.f32 %v74, %v929
    %v931 = vand.u32 %v930, 4294901760
    %932 = vmatmul.mubr.f32.gmra.mrb[0].mxu0 %v931
    %v933 = vpop.f32.mrb[0].mxu0
    %v934 = vadd.f32 %v722, %v933
    %v935 = vpop.f32.mrb[0].mxu0
    %v936 = vadd.f32 %v724, %v935
    %937 = vmatprep.mubr.f32.mxu0 0.0
    %v938 = vand.u32 %v77, 4294901760
    %v939 = vsub.f32 %v77, %v938
    %v940 = vand.u32 %v939, 4294901760
    %941 = vmatmul.mubr.f32.gmra.mrb[0].mxu0 %v940
    %v942 = vpop.f32.mrb[0].mxu0
    %v943 = vadd.f32 %v730, %v942
    %v944 = vpop.f32.mrb[0].mxu0
    %v945 = vadd.f32 %v732, %v944
    %946 = vmatprep.mubr.f32.mxu0 0.0
    %v947 = vand.u32 %v80, 4294901760
    %v948 = vsub.f32 %v80, %v947
    %v949 = vand.u32 %v948, 4294901760
    %950 = vmatmul.mubr.f32.gmra.mrb[0].mxu0 %v949
    %v951 = vpop.f32.mrb[0].mxu0
    %v952 = vadd.f32 %v738, %v951
    %v953 = vpop.f32.mrb[0].mxu0
    %v954 = vadd.f32 %v740, %v953
    %955 = vmatprep.mubr.f32.mxu0 0.0
    %v956 = vand.u32 %v83, 4294901760
    %v957 = vsub.f32 %v83, %v956
    %v958 = vand.u32 %v957, 4294901760
    %959 = vmatmul.mubr.f32.gmra.mrb[0].mxu0 %v958
    %v960 = vpop.f32.mrb[0].mxu0
    %v961 = vadd.f32 %v746, %v960
    %v962 = vpop.f32.mrb[0].mxu0
    %v963 = vadd.f32 %v748, %v962
    %964 = vmatprep.mubr.f32.mxu0 0.0
    %v965 = vand.u32 %v86, 4294901760
    %v966 = vsub.f32 %v86, %v965
    %v967 = vand.u32 %v966, 4294901760
    %968 = vmatmul.mubr.f32.gmra.mrb[0].mxu0 %v967
    %v969 = vpop.f32.mrb[0].mxu0
    %v970 = vadd.f32 %v754, %v969
    %v971 = vpop.f32.mrb[0].mxu0
    %v972 = vadd.f32 %v756, %v971
    %973 = vmatprep.mubr.f32.mxu0 0.0
    %v974 = vand.u32 %v89, 4294901760
    %v975 = vsub.f32 %v89, %v974
    %v976 = vand.u32 %v975, 4294901760
    %977 = vmatmul.mubr.f32.gmra.mrb[0].mxu0 %v976
    %v978 = vpop.f32.mrb[0].mxu0
    %v979 = vadd.f32 %v762, %v978
    %v980 = vpop.f32.mrb[0].mxu0
    %v981 = vadd.f32 %v764, %v980
    %982 = vdwg.mxu0
    %v983 = vand.u32 %v35, 4294901760
    %v984 = vsub.f32 %v35, %v983
    %v985 = vand.u32 %v984, 4294901760
    %986 = vmatprep.subr.mxu0 %v985
    %v987 = vand.u32 %v34, 4294901760
    %v988 = vsub.f32 %v34, %v987
    %v989 = vand.u32 %v988, 4294901760
    %990 = vmatpush1.msra.mxu0 %v989
    %v991 = vand.u32 %v37, 4294901760
    %v992 = vsub.f32 %v37, %v991
    %v993 = vand.u32 %v992, 4294901760
    %994 = vmatprep.subr.mxu0 %v993
    %v995 = vand.u32 %v36, 4294901760
    %v996 = vsub.f32 %v36, %v995
    %v997 = vand.u32 %v996, 4294901760
    %998 = vmatpush1.msra.mxu0 %v997
    %v999 = vand.u32 %v39, 4294901760
    %v1000 = vsub.f32 %v39, %v999
    %v1001 = vand.u32 %v1000, 4294901760
    %1002 = vmatprep.subr.mxu0 %v1001
    %v1003 = vand.u32 %v38, 4294901760
    %v1004 = vsub.f32 %v38, %v1003
    %v1005 = vand.u32 %v1004, 4294901760
    %1006 = vmatpush1.msra.mxu0 %v1005
    %v1007 = vand.u32 %v41, 4294901760
    %v1008 = vsub.f32 %v41, %v1007
    %v1009 = vand.u32 %v1008, 4294901760
    %1010 = vmatprep.subr.mxu0 %v1009
    %v1011 = vand.u32 %v40, 4294901760
    %v1012 = vsub.f32 %v40, %v1011
    %v1013 = vand.u32 %v1012, 4294901760
    %1014 = vmatpush1.msra.mxu0 %v1013
    %1015 = vmatprep.subr.mxu0 0.0
    %1016 = vmatpush1.msra.mxu0 0.0
    %1017 = vmatprep.subr.mxu0 0.0
    %1018 = vmatpush1.msra.mxu0 0.0
    %1019 = vmatprep.subr.mxu0 0.0
    %1020 = vmatpush1.msra.mxu0 0.0
    %1021 = vmatprep.subr.mxu0 0.0
    %1022 = vmatpush1.msra.mxu0 0.0
    %1023 = vmatprep.subr.mxu0 0.0
    %1024 = vmatpush1.msra.mxu0 0.0
    %1025 = vmatprep.subr.mxu0 0.0
    %1026 = vmatpush1.msra.mxu0 0.0
    %1027 = vmatprep.subr.mxu0 0.0
    %1028 = vmatpush1.msra.mxu0 0.0
    %1029 = vmatprep.subr.mxu0 0.0
    %1030 = vmatpush1.msra.mxu0 0.0
    %1031 = vmatprep.subr.mxu0 0.0
    %1032 = vmatpush1.msra.mxu0 0.0
    %1033 = vmatprep.subr.mxu0 0.0
    %1034 = vmatpush1.msra.mxu0 0.0
    %1035 = vmatprep.subr.mxu0 0.0
    %1036 = vmatpush1.msra.mxu0 0.0
    %1037 = vmatprep.subr.mxu0 0.0
    %1038 = vmatpush1.msra.mxu0 0.0
    %1039 = vmatprep.subr.mxu0 0.0
    %1040 = vmatpush1.msra.mxu0 0.0
    %1041 = vmatprep.subr.mxu0 0.0
    %1042 = vmatpush1.msra.mxu0 0.0
    %1043 = vmatprep.subr.mxu0 0.0
    %1044 = vmatpush1.msra.mxu0 0.0
    %1045 = vmatprep.subr.mxu0 0.0
    %1046 = vmatpush1.msra.mxu0 0.0
    %1047 = vmatprep.subr.mxu0 0.0
    %1048 = vmatpush1.msra.mxu0 0.0
    %1049 = vmatprep.subr.mxu0 0.0
    %1050 = vmatpush1.msra.mxu0 0.0
    %1051 = vmatprep.subr.mxu0 0.0
    %1052 = vmatpush1.msra.mxu0 0.0
    %1053 = vmatprep.subr.mxu0 0.0
    %1054 = vmatpush1.msra.mxu0 0.0
    %1055 = vmatprep.subr.mxu0 0.0
    %1056 = vmatpush1.msra.mxu0 0.0
    %1057 = vmatprep.subr.mxu0 0.0
    %1058 = vmatpush1.msra.mxu0 0.0
    %1059 = vmatprep.subr.mxu0 0.0
    %1060 = vmatpush1.msra.mxu0 0.0
    %1061 = vmatprep.subr.mxu0 0.0
    %1062 = vmatpush1.msra.mxu0 0.0
    %1063 = vmatprep.subr.mxu0 0.0
    %1064 = vmatpush1.msra.mxu0 0.0
    %1065 = vmatprep.subr.mxu0 0.0
    %1066 = vmatpush1.msra.mxu0 0.0
    %1067 = vmatprep.subr.mxu0 0.0
    %1068 = vmatpush1.msra.mxu0 0.0
    %1069 = vmatprep.subr.mxu0 0.0
    %1070 = vmatpush1.msra.mxu0 0.0
    %1071 = vmatprep.mubr.f32.mxu0 0.0
    %v1072 = vand.u32 %v44, 4294901760
    %1073 = vmatmul.mubr.f32.gmra.mrb[0].mxu0 %v1072
    %v1074 = vpop.f32.mrb[0].mxu0
    %v1075 = vadd.f32 %v844, %v1074
    %v1076 = vpop.f32.mrb[0].mxu0
    %v1077 = vadd.f32 %v846, %v1076
    %1078 = vmatprep.mubr.f32.mxu0 0.0
    %v1079 = vand.u32 %v47, 4294901760
    %1080 = vmatmul.mubr.f32.gmra.mrb[0].mxu0 %v1079
    %v1081 = vpop.f32.mrb[0].mxu0
    %v1082 = vadd.f32 %v853, %v1081
    %v1083 = vpop.f32.mrb[0].mxu0
    %v1084 = vadd.f32 %v855, %v1083
    %1085 = vmatprep.mubr.f32.mxu0 0.0
    %v1086 = vand.u32 %v50, 4294901760
    %1087 = vmatmul.mubr.f32.gmra.mrb[0].mxu0 %v1086
    %v1088 = vpop.f32.mrb[0].mxu0
    %v1089 = vadd.f32 %v862, %v1088
    %v1090 = vpop.f32.mrb[0].mxu0
    %v1091 = vadd.f32 %v864, %v1090
    %1092 = vmatprep.mubr.f32.mxu0 0.0
    %v1093 = vand.u32 %v53, 4294901760
    %1094 = vmatmul.mubr.f32.gmra.mrb[0].mxu0 %v1093
    %v1095 = vpop.f32.mrb[0].mxu0
    %v1096 = vadd.f32 %v871, %v1095
    %v1097 = vpop.f32.mrb[0].mxu0
    %v1098 = vadd.f32 %v873, %v1097
    %1099 = vmatprep.mubr.f32.mxu0 0.0
    %v1100 = vand.u32 %v56, 4294901760
    %1101 = vmatmul.mubr.f32.gmra.mrb[0].mxu0 %v1100
    %v1102 = vpop.f32.mrb[0].mxu0
    %v1103 = vadd.f32 %v880, %v1102
    %v1104 = vpop.f32.mrb[0].mxu0
    %v1105 = vadd.f32 %v882, %v1104
    %1106 = vmatprep.mubr.f32.mxu0 0.0
    %v1107 = vand.u32 %v59, 4294901760
    %1108 = vmatmul.mubr.f32.gmra.mrb[0].mxu0 %v1107
    %v1109 = vpop.f32.mrb[0].mxu0
    %v1110 = vadd.f32 %v889, %v1109
    %v1111 = vpop.f32.mrb[0].mxu0
    %v1112 = vadd.f32 %v891, %v1111
    %1113 = vmatprep.mubr.f32.mxu0 0.0
    %v1114 = vand.u32 %v62, 4294901760
    %1115 = vmatmul.mubr.f32.gmra.mrb[0].mxu0 %v1114
    %v1116 = vpop.f32.mrb[0].mxu0
    %v1117 = vadd.f32 %v898, %v1116
    %v1118 = vpop.f32.mrb[0].mxu0
    %v1119 = vadd.f32 %v900, %v1118
    %1120 = vmatprep.mubr.f32.mxu0 0.0
    %v1121 = vand.u32 %v65, 4294901760
    %1122 = vmatmul.mubr.f32.gmra.mrb[0].mxu0 %v1121
    %v1123 = vpop.f32.mrb[0].mxu0
    %v1124 = vadd.f32 %v907, %v1123
    %v1125 = vpop.f32.mrb[0].mxu0
    %v1126 = vadd.f32 %v909, %v1125
    %1127 = vmatprep.mubr.f32.mxu0 0.0
    %v1128 = vand.u32 %v68, 4294901760
    %1129 = vmatmul.mubr.f32.gmra.mrb[0].mxu0 %v1128
    %v1130 = vpop.f32.mrb[0].mxu0
    %v1131 = vadd.f32 %v916, %v1130
    %v1132 = vpop.f32.mrb[0].mxu0
    %v1133 = vadd.f32 %v918, %v1132
    %1134 = vmatprep.mubr.f32.mxu0 0.0
    %v1135 = vand.u32 %v71, 4294901760
    %1136 = vmatmul.mubr.f32.gmra.mrb[0].mxu0 %v1135
    %v1137 = vpop.f32.mrb[0].mxu0
    %v1138 = vadd.f32 %v925, %v1137
    %v1139 = vpop.f32.mrb[0].mxu0
    %v1140 = vadd.f32 %v927, %v1139
    %1141 = vmatprep.mubr.f32.mxu0 0.0
    %v1142 = vand.u32 %v74, 4294901760
    %1143 = vmatmul.mubr.f32.gmra.mrb[0].mxu0 %v1142
    %v1144 = vpop.f32.mrb[0].mxu0
    %v1145 = vadd.f32 %v934, %v1144
    %v1146 = vpop.f32.mrb[0].mxu0
    %v1147 = vadd.f32 %v936, %v1146
    %1148 = vmatprep.mubr.f32.mxu0 0.0
    %v1149 = vand.u32 %v77, 4294901760
    %1150 = vmatmul.mubr.f32.gmra.mrb[0].mxu0 %v1149
    %v1151 = vpop.f32.mrb[0].mxu0
    %v1152 = vadd.f32 %v943, %v1151
    %v1153 = vpop.f32.mrb[0].mxu0
    %v1154 = vadd.f32 %v945, %v1153
    %1155 = vmatprep.mubr.f32.mxu0 0.0
    %v1156 = vand.u32 %v80, 4294901760
    %1157 = vmatmul.mubr.f32.gmra.mrb[0].mxu0 %v1156
    %v1158 = vpop.f32.mrb[0].mxu0
    %v1159 = vadd.f32 %v952, %v1158
    %v1160 = vpop.f32.mrb[0].mxu0
    %v1161 = vadd.f32 %v954, %v1160
    %1162 = vmatprep.mubr.f32.mxu0 0.0
    %v1163 = vand.u32 %v83, 4294901760
    %1164 = vmatmul.mubr.f32.gmra.mrb[0].mxu0 %v1163
    %v1165 = vpop.f32.mrb[0].mxu0
    %v1166 = vadd.f32 %v961, %v1165
    %v1167 = vpop.f32.mrb[0].mxu0
    %v1168 = vadd.f32 %v963, %v1167
    %1169 = vmatprep.mubr.f32.mxu0 0.0
    %v1170 = vand.u32 %v86, 4294901760
    %1171 = vmatmul.mubr.f32.gmra.mrb[0].mxu0 %v1170
    %v1172 = vpop.f32.mrb[0].mxu0
    %v1173 = vadd.f32 %v970, %v1172
    %v1174 = vpop.f32.mrb[0].mxu0
    %v1175 = vadd.f32 %v972, %v1174
    %1176 = vmatprep.mubr.f32.mxu0 0.0
    %v1177 = vand.u32 %v89, 4294901760
    %1178 = vmatmul.mubr.f32.gmra.mrb[0].mxu0 %v1177
    %v1179 = vpop.f32.mrb[0].mxu0
    %v1180 = vadd.f32 %v979, %v1179
    %v1181 = vpop.f32.mrb[0].mxu0
    %v1182 = vadd.f32 %v981, %v1181
    %1183 = vdwg.mxu0
    %v1184 = vand.u32 %v35, 4294901760
    %1185 = vmatprep.subr.mxu0 %v1184
    %v1186 = vand.u32 %v34, 4294901760
    %1187 = vmatpush1.msra.mxu0 %v1186
    %v1188 = vand.u32 %v37, 4294901760
    %1189 = vmatprep.subr.mxu0 %v1188
    %v1190 = vand.u32 %v36, 4294901760
    %1191 = vmatpush1.msra.mxu0 %v1190
    %v1192 = vand.u32 %v39, 4294901760
    %1193 = vmatprep.subr.mxu0 %v1192
    %v1194 = vand.u32 %v38, 4294901760
    %1195 = vmatpush1.msra.mxu0 %v1194
    %v1196 = vand.u32 %v41, 4294901760
    %1197 = vmatprep.subr.mxu0 %v1196
    %v1198 = vand.u32 %v40, 4294901760
    %1199 = vmatpush1.msra.mxu0 %v1198
    %1200 = vmatprep.subr.mxu0 0.0
    %1201 = vmatpush1.msra.mxu0 0.0
    %1202 = vmatprep.subr.mxu0 0.0
    %1203 = vmatpush1.msra.mxu0 0.0
    %1204 = vmatprep.subr.mxu0 0.0
    %1205 = vmatpush1.msra.mxu0 0.0
    %1206 = vmatprep.subr.mxu0 0.0
    %1207 = vmatpush1.msra.mxu0 0.0
    %1208 = vmatprep.subr.mxu0 0.0
    %1209 = vmatpush1.msra.mxu0 0.0
    %1210 = vmatprep.subr.mxu0 0.0
    %1211 = vmatpush1.msra.mxu0 0.0
    %1212 = vmatprep.subr.mxu0 0.0
    %1213 = vmatpush1.msra.mxu0 0.0
    %1214 = vmatprep.subr.mxu0 0.0
    %1215 = vmatpush1.msra.mxu0 0.0
    %1216 = vmatprep.subr.mxu0 0.0
    %1217 = vmatpush1.msra.mxu0 0.0
    %1218 = vmatprep.subr.mxu0 0.0
    %1219 = vmatpush1.msra.mxu0 0.0
    %1220 = vmatprep.subr.mxu0 0.0
    %1221 = vmatpush1.msra.mxu0 0.0
    %1222 = vmatprep.subr.mxu0 0.0
    %1223 = vmatpush1.msra.mxu0 0.0
    %1224 = vmatprep.subr.mxu0 0.0
    %1225 = vmatpush1.msra.mxu0 0.0
    %1226 = vmatprep.subr.mxu0 0.0
    %1227 = vmatpush1.msra.mxu0 0.0
    %1228 = vmatprep.subr.mxu0 0.0
    %1229 = vmatpush1.msra.mxu0 0.0
    %1230 = vmatprep.subr.mxu0 0.0
    %1231 = vmatpush1.msra.mxu0 0.0
    %1232 = vmatprep.subr.mxu0 0.0
    %1233 = vmatpush1.msra.mxu0 0.0
    %1234 = vmatprep.subr.mxu0 0.0
    %1235 = vmatpush1.msra.mxu0 0.0
    %1236 = vmatprep.subr.mxu0 0.0
    %1237 = vmatpush1.msra.mxu0 0.0
    %1238 = vmatprep.subr.mxu0 0.0
    %1239 = vmatpush1.msra.mxu0 0.0
    %1240 = vmatprep.subr.mxu0 0.0
    %1241 = vmatpush1.msra.mxu0 0.0
    %1242 = vmatprep.subr.mxu0 0.0
    %1243 = vmatpush1.msra.mxu0 0.0
    %1244 = vmatprep.subr.mxu0 0.0
    %1245 = vmatpush1.msra.mxu0 0.0
    %1246 = vmatprep.subr.mxu0 0.0
    %1247 = vmatpush1.msra.mxu0 0.0
    %1248 = vmatprep.subr.mxu0 0.0
    %1249 = vmatpush1.msra.mxu0 0.0
    %1250 = vmatprep.subr.mxu0 0.0
    %1251 = vmatpush1.msra.mxu0 0.0
    %1252 = vmatprep.subr.mxu0 0.0
    %1253 = vmatpush1.msra.mxu0 0.0
    %1254 = vmatprep.subr.mxu0 0.0
    %1255 = vmatpush1.msra.mxu0 0.0
    %1256 = vmatprep.mubr.f32.mxu0 0.0
    %v1257 = vand.u32 %v44, 4294901760
    %1258 = vmatmul.mubr.f32.gmra.mrb[0].mxu0 %v1257
    %v1259 = vpop.f32.mrb[0].mxu0
    %v1260 = vadd.f32 %v1075, %v1259
    %v1261 = vpop.f32.mrb[0].mxu0
    %v1262 = vadd.f32 %v1077, %v1261
    %1263 = vmatprep.mubr.f32.mxu0 0.0
    %v1264 = vand.u32 %v47, 4294901760
    %1265 = vmatmul.mubr.f32.gmra.mrb[0].mxu0 %v1264
    %v1266 = vpop.f32.mrb[0].mxu0
    %v1267 = vadd.f32 %v1082, %v1266
    %v1268 = vpop.f32.mrb[0].mxu0
    %v1269 = vadd.f32 %v1084, %v1268
    %1270 = vmatprep.mubr.f32.mxu0 0.0
    %v1271 = vand.u32 %v50, 4294901760
    %1272 = vmatmul.mubr.f32.gmra.mrb[0].mxu0 %v1271
    %v1273 = vpop.f32.mrb[0].mxu0
    %v1274 = vadd.f32 %v1089, %v1273
    %v1275 = vpop.f32.mrb[0].mxu0
    %v1276 = vadd.f32 %v1091, %v1275
    %1277 = vmatprep.mubr.f32.mxu0 0.0
    %v1278 = vand.u32 %v53, 4294901760
    %1279 = vmatmul.mubr.f32.gmra.mrb[0].mxu0 %v1278
    %v1280 = vpop.f32.mrb[0].mxu0
    %v1281 = vadd.f32 %v1096, %v1280
    %v1282 = vpop.f32.mrb[0].mxu0
    %v1283 = vadd.f32 %v1098, %v1282
    %1284 = vmatprep.mubr.f32.mxu0 0.0
    %v1285 = vand.u32 %v56, 4294901760
    %1286 = vmatmul.mubr.f32.gmra.mrb[0].mxu0 %v1285
    %v1287 = vpop.f32.mrb[0].mxu0
    %v1288 = vadd.f32 %v1103, %v1287
    %v1289 = vpop.f32.mrb[0].mxu0
    %v1290 = vadd.f32 %v1105, %v1289
    %1291 = vmatprep.mubr.f32.mxu0 0.0
    %v1292 = vand.u32 %v59, 4294901760
    %1293 = vmatmul.mubr.f32.gmra.mrb[0].mxu0 %v1292
    %v1294 = vpop.f32.mrb[0].mxu0
    %v1295 = vadd.f32 %v1110, %v1294
    %v1296 = vpop.f32.mrb[0].mxu0
    %v1297 = vadd.f32 %v1112, %v1296
    %1298 = vmatprep.mubr.f32.mxu0 0.0
    %v1299 = vand.u32 %v62, 4294901760
    %1300 = vmatmul.mubr.f32.gmra.mrb[0].mxu0 %v1299
    %v1301 = vpop.f32.mrb[0].mxu0
    %v1302 = vadd.f32 %v1117, %v1301
    %v1303 = vpop.f32.mrb[0].mxu0
    %v1304 = vadd.f32 %v1119, %v1303
    %1305 = vmatprep.mubr.f32.mxu0 0.0
    %v1306 = vand.u32 %v65, 4294901760
    %1307 = vmatmul.mubr.f32.gmra.mrb[0].mxu0 %v1306
    %v1308 = vpop.f32.mrb[0].mxu0
    %v1309 = vadd.f32 %v1124, %v1308
    %v1310 = vpop.f32.mrb[0].mxu0
    %v1311 = vadd.f32 %v1126, %v1310
    %1312 = vmatprep.mubr.f32.mxu0 0.0
    %v1313 = vand.u32 %v68, 4294901760
    %1314 = vmatmul.mubr.f32.gmra.mrb[0].mxu0 %v1313
    %v1315 = vpop.f32.mrb[0].mxu0
    %v1316 = vadd.f32 %v1131, %v1315
    %v1317 = vpop.f32.mrb[0].mxu0
    %v1318 = vadd.f32 %v1133, %v1317
    %1319 = vmatprep.mubr.f32.mxu0 0.0
    %v1320 = vand.u32 %v71, 4294901760
    %1321 = vmatmul.mubr.f32.gmra.mrb[0].mxu0 %v1320
    %v1322 = vpop.f32.mrb[0].mxu0
    %v1323 = vadd.f32 %v1138, %v1322
    %v1324 = vpop.f32.mrb[0].mxu0
    %v1325 = vadd.f32 %v1140, %v1324
    %1326 = vmatprep.mubr.f32.mxu0 0.0
    %v1327 = vand.u32 %v74, 4294901760
    %1328 = vmatmul.mubr.f32.gmra.mrb[0].mxu0 %v1327
    %v1329 = vpop.f32.mrb[0].mxu0
    %v1330 = vadd.f32 %v1145, %v1329
    %v1331 = vpop.f32.mrb[0].mxu0
    %v1332 = vadd.f32 %v1147, %v1331
    %1333 = vmatprep.mubr.f32.mxu0 0.0
    %v1334 = vand.u32 %v77, 4294901760
    %1335 = vmatmul.mubr.f32.gmra.mrb[0].mxu0 %v1334
    %v1336 = vpop.f32.mrb[0].mxu0
    %v1337 = vadd.f32 %v1152, %v1336
    %v1338 = vpop.f32.mrb[0].mxu0
    %v1339 = vadd.f32 %v1154, %v1338
    %1340 = vmatprep.mubr.f32.mxu0 0.0
    %v1341 = vand.u32 %v80, 4294901760
    %1342 = vmatmul.mubr.f32.gmra.mrb[0].mxu0 %v1341
    %v1343 = vpop.f32.mrb[0].mxu0
    %v1344 = vadd.f32 %v1159, %v1343
    %v1345 = vpop.f32.mrb[0].mxu0
    %v1346 = vadd.f32 %v1161, %v1345
    %1347 = vmatprep.mubr.f32.mxu0 0.0
    %v1348 = vand.u32 %v83, 4294901760
    %1349 = vmatmul.mubr.f32.gmra.mrb[0].mxu0 %v1348
    %v1350 = vpop.f32.mrb[0].mxu0
    %v1351 = vadd.f32 %v1166, %v1350
    %v1352 = vpop.f32.mrb[0].mxu0
    %v1353 = vadd.f32 %v1168, %v1352
    %1354 = vmatprep.mubr.f32.mxu0 0.0
    %v1355 = vand.u32 %v86, 4294901760
    %1356 = vmatmul.mubr.f32.gmra.mrb[0].mxu0 %v1355
    %v1357 = vpop.f32.mrb[0].mxu0
    %v1358 = vadd.f32 %v1173, %v1357
    %v1359 = vpop.f32.mrb[0].mxu0
    %v1360 = vadd.f32 %v1175, %v1359
    %1361 = vmatprep.mubr.f32.mxu0 0.0
    %v1362 = vand.u32 %v89, 4294901760
    %1363 = vmatmul.mubr.f32.gmra.mrb[0].mxu0 %v1362
    %v1364 = vpop.f32.mrb[0].mxu0
    %v1365 = vadd.f32 %v1180, %v1364
    %v1366 = vpop.f32.mrb[0].mxu0
    %v1367 = vadd.f32 %v1182, %v1366
    %1368 = vdwg.mxu0
    %v1369 = vld [vmem:[%s2] sm:$0xff]
    %v1370 = vld [vmem:[%s2 + $0x8] sm:$0xff]
    %v1371 = vld [vmem:[%s2 + $0x10] sm:$0xff]
    %v1372 = vld [vmem:[%s2 + $0x18] sm:$0xff]
    %v1373 = vld [vmem:[%s2 + $0x20] sm:$0xff]
    %v1374 = vld [vmem:[%s2 + $0x28] sm:$0xff]
    %v1375 = vld [vmem:[%s2 + $0x30] sm:$0xff]
    %v1376 = vld [vmem:[%s2 + $0x38] sm:$0xff]
    %v1377 = vlaneseq
    %v1378 = vshrl.u32 %v1377, 7
    %v1379 = vadd.s32 %v1378, 8
    %v1380 = vadd.s32 %v1378, 16
    %v1381 = vadd.s32 %v1378, 24
    %v1382 = vadd.s32 %v1378, 32
    %v1383 = vadd.s32 %v1378, 40
    %v1384 = vadd.s32 %v1378, 48
    %v1385 = vadd.s32 %v1378, 56
    %v1386 = vadd.s32 %v1378, 64
    %v1387 = vadd.s32 %v1378, 72
    %v1388 = vadd.s32 %v1378, 80
    %v1389 = vadd.s32 %v1378, 88
    %v1390 = vadd.s32 %v1378, 96
    %v1391 = vadd.s32 %v1378, 104
    %v1392 = vadd.s32 %v1378, 112
    %v1393 = vadd.s32 %v1378, 120
    %v1394 = vld [vmem:[%s3] sm:$0x3]
    %v1395 = vmul.u32 %v1394, 32
    %v1396 = vlaneseq
    %v1397 = vshrl.u32 %v1396, 7
    %v1398 = vsub.s32 0, %v1397
    %v1399 = vrot.slane %v1395, %v1398
    %v1400 = vlaneseq
    %v1401 = vshrl.u32 %v1400, 7
    %v1402 = vsub.s32 1, %v1401
    %v1403 = vrot.slane %v1395, %v1402
    %vm1404 = vcmp.ge.s32.totalorder %v1378, %v1399
    %vm1405 = vcmp.ge.s32.totalorder %v1378, %v1403
    %vm1406 = vcmp.ge.s32.totalorder %v1379, %v1399
    %vm1407 = vcmp.ge.s32.totalorder %v1379, %v1403
    %vm1408 = vcmp.ge.s32.totalorder %v1380, %v1399
    %vm1409 = vcmp.ge.s32.totalorder %v1380, %v1403
    %vm1410 = vcmp.ge.s32.totalorder %v1381, %v1399
    %vm1411 = vcmp.ge.s32.totalorder %v1381, %v1403
    %vm1412 = vcmp.ge.s32.totalorder %v1382, %v1399
    %vm1413 = vcmp.ge.s32.totalorder %v1382, %v1403
    %vm1414 = vcmp.ge.s32.totalorder %v1383, %v1399
    %vm1415 = vcmp.ge.s32.totalorder %v1383, %v1403
    %vm1416 = vcmp.ge.s32.totalorder %v1384, %v1399
    %vm1417 = vcmp.ge.s32.totalorder %v1384, %v1403
    %vm1418 = vcmp.ge.s32.totalorder %v1385, %v1399
    %vm1419 = vcmp.ge.s32.totalorder %v1385, %v1403
    %vm1420 = vcmp.ge.s32.totalorder %v1386, %v1399
    %vm1421 = vcmp.ge.s32.totalorder %v1386, %v1403
    %vm1422 = vcmp.ge.s32.totalorder %v1387, %v1399
    %vm1423 = vcmp.ge.s32.totalorder %v1387, %v1403
    %vm1424 = vcmp.ge.s32.totalorder %v1388, %v1399
    %vm1425 = vcmp.ge.s32.totalorder %v1388, %v1403
    %vm1426 = vcmp.ge.s32.totalorder %v1389, %v1399
    %vm1427 = vcmp.ge.s32.totalorder %v1389, %v1403
    %vm1428 = vcmp.ge.s32.totalorder %v1390, %v1399
    %vm1429 = vcmp.ge.s32.totalorder %v1390, %v1403
    %vm1430 = vcmp.ge.s32.totalorder %v1391, %v1399
    %vm1431 = vcmp.ge.s32.totalorder %v1391, %v1403
    %vm1432 = vcmp.ge.s32.totalorder %v1392, %v1399
    %vm1433 = vcmp.ge.s32.totalorder %v1392, %v1403
    %vm1434 = vcmp.ge.s32.totalorder %v1393, %v1399
    %vm1435 = vcmp.ge.s32.totalorder %v1393, %v1403
    %v1436 = vadd.s32 %v1395, 32
    %v1437 = vlaneseq
    %v1438 = vshrl.u32 %v1437, 7
    %v1439 = vsub.s32 0, %v1438
    %v1440 = vrot.slane %v1436, %v1439
    %v1441 = vlaneseq
    %v1442 = vshrl.u32 %v1441, 7
    %v1443 = vsub.s32 1, %v1442
    %v1444 = vrot.slane %v1436, %v1443
    %vm1445 = vcmp.lt.s32.totalorder %v1378, %v1440
    %vm1446 = vcmp.lt.s32.totalorder %v1378, %v1444
    %vm1447 = vcmp.lt.s32.totalorder %v1379, %v1440
    %vm1448 = vcmp.lt.s32.totalorder %v1379, %v1444
    %vm1449 = vcmp.lt.s32.totalorder %v1380, %v1440
    %vm1450 = vcmp.lt.s32.totalorder %v1380, %v1444
    %vm1451 = vcmp.lt.s32.totalorder %v1381, %v1440
    %vm1452 = vcmp.lt.s32.totalorder %v1381, %v1444
    %vm1453 = vcmp.lt.s32.totalorder %v1382, %v1440
    %vm1454 = vcmp.lt.s32.totalorder %v1382, %v1444
    %vm1455 = vcmp.lt.s32.totalorder %v1383, %v1440
    %vm1456 = vcmp.lt.s32.totalorder %v1383, %v1444
    %vm1457 = vcmp.lt.s32.totalorder %v1384, %v1440
    %vm1458 = vcmp.lt.s32.totalorder %v1384, %v1444
    %vm1459 = vcmp.lt.s32.totalorder %v1385, %v1440
    %vm1460 = vcmp.lt.s32.totalorder %v1385, %v1444
    %vm1461 = vcmp.lt.s32.totalorder %v1386, %v1440
    %vm1462 = vcmp.lt.s32.totalorder %v1386, %v1444
    %vm1463 = vcmp.lt.s32.totalorder %v1387, %v1440
    %vm1464 = vcmp.lt.s32.totalorder %v1387, %v1444
    %vm1465 = vcmp.lt.s32.totalorder %v1388, %v1440
    %vm1466 = vcmp.lt.s32.totalorder %v1388, %v1444
    %vm1467 = vcmp.lt.s32.totalorder %v1389, %v1440
    %vm1468 = vcmp.lt.s32.totalorder %v1389, %v1444
    %vm1469 = vcmp.lt.s32.totalorder %v1390, %v1440
    %vm1470 = vcmp.lt.s32.totalorder %v1390, %v1444
    %vm1471 = vcmp.lt.s32.totalorder %v1391, %v1440
    %vm1472 = vcmp.lt.s32.totalorder %v1391, %v1444
    %vm1473 = vcmp.lt.s32.totalorder %v1392, %v1440
    %vm1474 = vcmp.lt.s32.totalorder %v1392, %v1444
    %vm1475 = vcmp.lt.s32.totalorder %v1393, %v1440
    %vm1476 = vcmp.lt.s32.totalorder %v1393, %v1444
    %vm1477 = vmand %vm1404, %vm1445
    %vm1478 = vmand %vm1405, %vm1446
    %vm1479 = vmand %vm1406, %vm1447
    %vm1480 = vmand %vm1407, %vm1448
    %vm1481 = vmand %vm1408, %vm1449
    %vm1482 = vmand %vm1409, %vm1450
    %vm1483 = vmand %vm1410, %vm1451
    %vm1484 = vmand %vm1411, %vm1452
    %vm1485 = vmand %vm1412, %vm1453
    %vm1486 = vmand %vm1413, %vm1454
    %vm1487 = vmand %vm1414, %vm1455
    %vm1488 = vmand %vm1415, %vm1456
    %vm1489 = vmand %vm1416, %vm1457
    %vm1490 = vmand %vm1417, %vm1458
    %vm1491 = vmand %vm1418, %vm1459
    %vm1492 = vmand %vm1419, %vm1460
    %vm1493 = vmand %vm1420, %vm1461
    %vm1494 = vmand %vm1421, %vm1462
    %vm1495 = vmand %vm1422, %vm1463
    %vm1496 = vmand %vm1423, %vm1464
    %vm1497 = vmand %vm1424, %vm1465
    %vm1498 = vmand %vm1425, %vm1466
    %vm1499 = vmand %vm1426, %vm1467
    %vm1500 = vmand %vm1427, %vm1468
    %vm1501 = vmand %vm1428, %vm1469
    %vm1502 = vmand %vm1429, %vm1470
    %vm1503 = vmand %vm1430, %vm1471
    %vm1504 = vmand %vm1431, %vm1472
    %vm1505 = vmand %vm1432, %vm1473
    %vm1506 = vmand %vm1433, %vm1474
    %vm1507 = vmand %vm1434, %vm1475
    %vm1508 = vmand %vm1435, %vm1476
    %v1509 = vmul.f32 %v1260, %v1369
    %v1510 = vmul.f32 %v1262, %v1370
    %v1511 = vmul.f32 %v1267, %v1371
    %v1512 = vmul.f32 %v1269, %v1372
    %v1513 = vmul.f32 %v1274, %v1373
    %v1514 = vmul.f32 %v1276, %v1374
    %v1515 = vmul.f32 %v1281, %v1375
    %v1516 = vmul.f32 %v1283, %v1376
    %v1517 = vmul.f32 %v1288, %v1369
    %v1518 = vmul.f32 %v1290, %v1370
    %v1519 = vmul.f32 %v1295, %v1371
    %v1520 = vmul.f32 %v1297, %v1372
    %v1521 = vmul.f32 %v1302, %v1373
    %v1522 = vmul.f32 %v1304, %v1374
    %v1523 = vmul.f32 %v1309, %v1375
    %v1524 = vmul.f32 %v1311, %v1376
    %v1525 = vmul.f32 %v1316, %v1369
    %v1526 = vmul.f32 %v1318, %v1370
    %v1527 = vmul.f32 %v1323, %v1371
    %v1528 = vmul.f32 %v1325, %v1372
    %v1529 = vmul.f32 %v1330, %v1373
    %v1530 = vmul.f32 %v1332, %v1374
    %v1531 = vmul.f32 %v1337, %v1375
    %v1532 = vmul.f32 %v1339, %v1376
    %v1533 = vmul.f32 %v1344, %v1369
    %v1534 = vmul.f32 %v1346, %v1370
    %v1535 = vmul.f32 %v1351, %v1371
    %v1536 = vmul.f32 %v1353, %v1372
    %v1537 = vmul.f32 %v1358, %v1373
    %v1538 = vmul.f32 %v1360, %v1374
    %v1539 = vmul.f32 %v1365, %v1375
    %v1540 = vmul.f32 %v1367, %v1376
    %v1541 = vsel %vm1477, %v1509, 0.0
    %v1542 = vsel %vm1478, %v1510, 0.0
    %v1543 = vsel %vm1479, %v1511, 0.0
    %v1544 = vsel %vm1480, %v1512, 0.0
    %v1545 = vsel %vm1481, %v1513, 0.0
    %v1546 = vsel %vm1482, %v1514, 0.0
    %v1547 = vsel %vm1483, %v1515, 0.0
    %v1548 = vsel %vm1484, %v1516, 0.0
    %v1549 = vsel %vm1485, %v1517, 0.0
    %v1550 = vsel %vm1486, %v1518, 0.0
    %v1551 = vsel %vm1487, %v1519, 0.0
    %v1552 = vsel %vm1488, %v1520, 0.0
    %v1553 = vsel %vm1489, %v1521, 0.0
    %v1554 = vsel %vm1490, %v1522, 0.0
    %v1555 = vsel %vm1491, %v1523, 0.0
    %v1556 = vsel %vm1492, %v1524, 0.0
    %v1557 = vsel %vm1493, %v1525, 0.0
    %v1558 = vsel %vm1494, %v1526, 0.0
    %v1559 = vsel %vm1495, %v1527, 0.0
    %v1560 = vsel %vm1496, %v1528, 0.0
    %v1561 = vsel %vm1497, %v1529, 0.0
    %v1562 = vsel %vm1498, %v1530, 0.0
    %v1563 = vsel %vm1499, %v1531, 0.0
    %v1564 = vsel %vm1500, %v1532, 0.0
    %v1565 = vsel %vm1501, %v1533, 0.0
    %v1566 = vsel %vm1502, %v1534, 0.0
    %v1567 = vsel %vm1503, %v1535, 0.0
    %v1568 = vsel %vm1504, %v1536, 0.0
    %v1569 = vsel %vm1505, %v1537, 0.0
    %v1570 = vsel %vm1506, %v1538, 0.0
    %v1571 = vsel %vm1507, %v1539, 0.0
    %v1572 = vsel %vm1508, %v1540, 0.0
    %v1573 = vadd.f32 %v1541, %v1543
    %v1574 = vadd.f32 %v1573, %v1545
    %v1575 = vadd.f32 %v1574, %v1547
    %v1576 = vadd.f32 %v1575, %v1549
    %v1577 = vadd.f32 %v1576, %v1551
    %v1578 = vadd.f32 %v1577, %v1553
    %v1579 = vadd.f32 %v1578, %v1555
    %v1580 = vadd.f32 %v1579, %v1557
    %v1581 = vadd.f32 %v1580, %v1559
    %v1582 = vadd.f32 %v1581, %v1561
    %v1583 = vadd.f32 %v1582, %v1563
    %v1584 = vadd.f32 %v1583, %v1565
    %v1585 = vadd.f32 %v1584, %v1567
    %v1586 = vadd.f32 %v1585, %v1569
    %v1587 = vadd.f32 %v1586, %v1571
    %v1588 = vrot.slane %v1587, 4
    %v1589 = vadd.f32 %v1587, %v1588
    %v1590 = vrot.slane %v1589, 2
    %v1591 = vadd.f32 %v1589, %v1590
    %v1592 = vrot.slane %v1591, 1
    %v1593 = vadd.f32 %v1591, %v1592
    %v1594 = vadd.f32 %v1542, %v1544
    %v1595 = vadd.f32 %v1594, %v1546
    %v1596 = vadd.f32 %v1595, %v1548
    %v1597 = vadd.f32 %v1596, %v1550
    %v1598 = vadd.f32 %v1597, %v1552
    %v1599 = vadd.f32 %v1598, %v1554
    %v1600 = vadd.f32 %v1599, %v1556
    %v1601 = vadd.f32 %v1600, %v1558
    %v1602 = vadd.f32 %v1601, %v1560
    %v1603 = vadd.f32 %v1602, %v1562
    %v1604 = vadd.f32 %v1603, %v1564
    %v1605 = vadd.f32 %v1604, %v1566
    %v1606 = vadd.f32 %v1605, %v1568
    %v1607 = vadd.f32 %v1606, %v1570
    %v1608 = vadd.f32 %v1607, %v1572
    %v1609 = vrot.slane %v1608, 4
    %v1610 = vadd.f32 %v1608, %v1609
    %v1611 = vrot.slane %v1610, 2
    %v1612 = vadd.f32 %v1610, %v1611
    %v1613 = vrot.slane %v1612, 1
    %v1614 = vadd.f32 %v1612, %v1613
    %v1617 = vcombine.low %v1593, %v1614
    %v1619 = vunpack.c.l.s4 1966171168
    %v1620 = vunpack.c.0.s8 %v1619
    %v1621 = vlaneseq
    %v1622 = vshrl.u32 %v1621, 7
    %v1623 = vsub.s32 %v1620, %v1622
    %v1624 = vrot.slane %v1617, %v1623
    %v1626 = vunpack.c.l.s4 1966171168
    %v1627 = vunpack.c.0.s8 %v1626
    %v1628 = vlaneseq
    %v1629 = vshrl.u32 %v1628, 7
    %v1630 = vsub.s32 %v1627, %v1629
    %v1631 = vrot.slane %v1624, %v1630
    %v1633 = vlaneseq
    %vm1634 = vcmp.ge.s32.totalorder %v1633, 0
    %vm1635 = vcmp.lt.s32.totalorder %v1633, 256
    %vm1636 = vmand %vm1634, %vm1635
    %1637 = vst.msk [vmem:[#allocation2] sm:$0x3] %vm1636, %v1631
    // Predicated region
    $region18: #{tpu_custom_call.1} parent=1 // pred_check
      _
    $region19: #{tpu_custom_call.1} parent=1 // pred_check_branch
      %1639 = sbr.rel (0) target = $region21
    $region20: #{tpu_custom_call.1} parent=1 // pred_region
      %s1641 = ssub.s32 32, 32
      %1642 = vsyncadd [#allocation3], %s1641
      %s1644 = sshll.u32 [#allocation2], 4
      %s1645 = int_to_ptr.vmem [resolvable:$true] %s1644
      %1647 = dma.vmem_to_hbm [thread:$0]  %s1645, 32, %s4, [#allocation3]
    $region21: #{tpu_custom_call.1} parent=1 // pred_fallthru
      _
    // Predicated region
    $region22: #{tpu_custom_call.1} parent=1 // pred_check
      _
    $region23: #{tpu_custom_call.1} parent=1 // pred_check_branch
      %1649 = sbr.rel (0) target = $region25
    $region24: #{tpu_custom_call.1} parent=1 // pred_region
      %1650 = dma.done [#allocation3], 32
    $region25: #{tpu_custom_call.1} parent=1 // pred_fallthru
      _
    %1651 = vsyncpa [#allocation3], 1

</llo_original>
